<compile_context>
chip_gen: v6e
topology: v6e:2x2x1
jax: 0.10.0
libtpu: 0.0.40
codegen_flags: <defaults>
</compile_context>

<pallas_src>
import functools

import jax
import jax.numpy as jnp
from jax import lax
from jax.experimental import pallas as pl
from jax.experimental.pallas import tpu as pltpu

ITER_N = 5  # SOCA uses SqrtmLayer(cov, 5)


def _choose_tile(M):
    """Pick a lane-dense M tile; return (TM, M_padded)."""
    m_pad = ((M + 127) // 128) * 128
    for tm in (2048, 1024, 512, 256, 128):
        if m_pad % tm == 0:
            return tm, m_pad
    return 128, m_pad  # unreachable (128 always divides m_pad)


def _vmem_limit(budget_bytes):
    # Raise scoped VMEM above the per-chip defaults when the block budget needs
    # it; never exceed v7x's 64 MiB physical VMEM.
    return int(max(32 << 20, min(64 << 20, 2 * budget_bytes + (8 << 20))))


def _soca_stats_kernel(x_ref, w1_ref, b1_ref, w2_ref, b2_ref, y_ref,
                       gram_ref, rsum_ref, *, C, M, iterN):
    # x_ref : VMEM (1, C, TM)  one M tile of one batch element, native dtype
    # w1_ref: VMEM (mid, C)    conv_du.0 1x1 weight (out, in)
    # b1_ref: VMEM (mid, 1)
    # w2_ref: VMEM (C, mid)    conv_du.2 1x1 weight (out, in)
    # b2_ref: VMEM (C, 1)
    # y_ref : VMEM (1, C, 1)   per-channel sigmoid gate (f32)
    # gram_ref / rsum_ref: VMEM scratch (C, C) / (C, 1), f32 accumulators
    m_idx = pl.program_id(1)

    @pl.when(m_idx == 0)
    def _():
        gram_ref[...] = jnp.zeros_like(gram_ref)
        rsum_ref[...] = jnp.zeros_like(rsum_ref)

    # ---- streaming second-order statistics (MXU, f32 accumulation) ----
    xt = x_ref[0]                                            # (C, TM), native dtype
    gram_ref[...] += lax.dot_general(
        xt, xt, (((1,), (1,)), ((), ())),
        preferred_element_type=jnp.float32)                  # += x_t @ x_t^T
    ones_tm = jnp.ones((xt.shape[1], 1), dtype=xt.dtype)
    rsum_ref[...] += jnp.dot(xt, ones_tm,
                             preferred_element_type=jnp.float32)   # += row sums

    @pl.when(m_idx == pl.num_programs(1) - 1)
    def _():
        inv_m = 1.0 / M
        # Covpool: cov = x I_hat x^T = gram/M - (rowsum rowsum^T)/M^2
        outer = lax.dot_general(rsum_ref[...], rsum_ref[...],
                                (((1,), (1,)), ((), ())),
                                preferred_element_type=jnp.float32)   # (C, C)
        cov = gram_ref[...] * inv_m - outer * (inv_m * inv_m)

        # identity helpers built from iota (no relayouts)
        ri = lax.broadcasted_iota(jnp.int32, (C, C), 0)
        ci = lax.broadcasted_iota(jnp.int32, (C, C), 1)
        eye = jnp.where(ri == ci, 1.0, 0.0).astype(jnp.float32)
        i3 = 3.0 * eye

        # Sqrtm: coupled Newton-Schulz iteration (iterN steps), all f32 on MXU.
        # normA ~ 0 (constant input) gives NaN/Inf exactly like PyTorch.
        normA = jnp.sum(cov * eye)                           # trace(cov)
        A = cov / normA
        ZY = 0.5 * (i3 - A)
        Y = jnp.dot(A, ZY, preferred_element_type=jnp.float32)
        Z = ZY
        for _ in range(iterN - 2):
            ZY = 0.5 * (i3 - jnp.dot(Z, Y, preferred_element_type=jnp.float32))
            Y, Z = (jnp.dot(Y, ZY, preferred_element_type=jnp.float32),
                    jnp.dot(ZY, Z, preferred_element_type=jnp.float32))
        ZY = 0.5 * jnp.dot(
            Y, i3 - jnp.dot(Z, Y, preferred_element_type=jnp.float32),
            preferred_element_type=jnp.float32)
        sqrt_cov = ZY * jnp.sqrt(normA)                      # (C, C)

        # channel descriptor, column orientation (sqrt_cov is symmetric, so the
        # row mean equals torch.mean(cov_sqrt, dim=1) up to fp noise)
        ones_c = jnp.full((C, 1), 1.0 / C, jnp.float32)
        d = jnp.dot(sqrt_cov, ones_c,
                    preferred_element_type=jnp.float32)      # (C, 1)

        # conv_du: two 1x1 convs == tiny column-oriented MLP on the MXU
        h = jnp.maximum(
            jnp.dot(w1_ref[...], d, preferred_element_type=jnp.float32)
            + b1_ref[...], 0.0)                              # (mid, 1)
        y = jax.nn.sigmoid(
            jnp.dot(w2_ref[...], h, preferred_element_type=jnp.float32)
            + b2_ref[...])                                   # (C, 1)
        y_ref[0] = y


def _soca_scale_kernel(x_ref, y_ref, o_ref):
    # x_ref: (1, C, TM) native dtype ; y_ref: (1, C, 1) f32 ; o_ref: (1, C, TM)
    o_ref[0] = (x_ref[0] * y_ref[0]).astype(o_ref.dtype)


def soca_forward(x, w1, b1, w2, b2, iterN=ITER_N):
    """x: (B, C, H, W); w1: (C//r, C); b1: (C//r,); w2: (C, C//r); b2: (C,)."""
    B, C, H, W = x.shape
    assert iterN >= 2
    # TODO(synk): SOCA's center-crop branch for h or w >= 1000 (x_sub != x) is
    # not implemented; realistic/demo shapes take the x_sub == x path.
    assert H < 1000 and W < 1000
    M = H * W
    mid = w1.shape[0]

    TM, M_pad = _choose_tile(M)
    NM = M_pad // TM

    x_flat = x.reshape(B, C, M)                     # free: NCHW is contiguous
    if M_pad != M:
        # zero padding is inert for gram / row-sum accumulation
        x_flat = jnp.pad(x_flat, ((0, 0), (0, 0), (0, M_pad - M)))

    w1f = w1.astype(jnp.float32)                    # (mid, C)
    w2f = w2.astype(jnp.float32)                    # (C, mid)
    b1f = b1.reshape(mid, 1).astype(jnp.float32)    # column-oriented biases
    b2f = b2.reshape(C, 1).astype(jnp.float32)

    xbytes = x_flat.dtype.itemsize

    # ---- pass 1: streaming Covpool + Sqrtm + conv_du -> gate y (B, C, 1) ----
    stats_kernel = functools.partial(_soca_stats_kernel, C=C, M=M, iterN=iterN)
    stats_budget = (2 * C * TM * xbytes            # double-buffered x tile
                    + (C * C + C) * 4              # gram + rowsum scratch
                    + 2 * C * 4                    # y output block
                    + 2 * 4 * (mid * C + mid + C * mid + C))   # weights
    y_gate = pl.pallas_call(
        stats_kernel,
        out_shape=jax.ShapeDtypeStruct((B, C, 1), jnp.float32),
        grid_spec=pltpu.PrefetchScalarGridSpec(
            num_scalar_prefetch=0,
            grid=(B, NM),
            in_specs=[
                pl.BlockSpec((1, C, TM), lambda b, m: (b, 0, m)),   # x tile
                pl.BlockSpec((mid, C), lambda b, m: (0, 0)),        # conv_du.0 W
                pl.BlockSpec((mid, 1), lambda b, m: (0, 0)),        # conv_du.0 b
                pl.BlockSpec((C, mid), lambda b, m: (0, 0)),        # conv_du.2 W
                pl.BlockSpec((C, 1), lambda b, m: (0, 0)),          # conv_du.2 b
            ],
            out_specs=pl.BlockSpec((1, C, 1), lambda b, m: (b, 0, 0)),
            scratch_shapes=[pltpu.VMEM((C, C), jnp.float32),
                            pltpu.VMEM((C, 1), jnp.float32)],
        ),
        compiler_params=pltpu.CompilerParams(
            dimension_semantics=("parallel", "arbitrary"),
            vmem_limit_bytes=_vmem_limit(stats_budget)),
    )(x_flat, w1f, b1f, w2f, b2f)

    # ---- pass 2: lane-dense elementwise scale out = y * x ----
    scale_budget = 2 * (2 * C * TM * xbytes) + 2 * C * 4
    out_flat = pl.pallas_call(
        _soca_scale_kernel,
        out_shape=jax.ShapeDtypeStruct((B, C, M_pad), x.dtype),
        grid_spec=pltpu.PrefetchScalarGridSpec(
            num_scalar_prefetch=0,
            grid=(B, NM),
            in_specs=[
                pl.BlockSpec((1, C, TM), lambda b, m: (b, 0, m)),
                pl.BlockSpec((1, C, 1), lambda b, m: (b, 0, 0)),
            ],
            out_specs=pl.BlockSpec((1, C, TM), lambda b, m: (b, 0, m)),
        ),
        compiler_params=pltpu.CompilerParams(
            dimension_semantics=("parallel", "parallel"),
            vmem_limit_bytes=_vmem_limit(scale_budget)),
    )(x_flat, y_gate)

    if M_pad != M:
        out_flat = out_flat[:, :, :M]
    return out_flat.reshape(B, C, H, W)


def soca_ref(x, w1, b1, w2, b2, iterN=ITER_N):
    """Pure-JAX reference mirroring the PyTorch SOCA forward (Covpool + Sqrtm)."""
    B, C, H, W = x.shape
    M = H * W
    hp = lax.Precision.HIGHEST
    xf = x.reshape(B, C, M).astype(jnp.float32)

    i_hat = (-1.0 / (M * M)) * jnp.ones((M, M), jnp.float32) \
            + (1.0 / M) * jnp.eye(M, dtype=jnp.float32)
    cov = jnp.matmul(jnp.matmul(xf, i_hat[None], precision=hp),
                     jnp.swapaxes(xf, 1, 2), precision=hp)        # (B, C, C)

    eye_c = jnp.eye(C, dtype=jnp.float32)
    i3 = 3.0 * eye_c[None]
    normA = jnp.trace(cov, axis1=1, axis2=2)                      # (B,)
    A = cov / normA[:, None, None]
    ZY = 0.5 * (i3 - A)
    Y = jnp.matmul(A, ZY, precision=hp)
    Z = ZY
    for _ in range(iterN - 2):
        ZY = 0.5 * (i3 - jnp.matmul(Z, Y, precision=hp))
        Y, Z = (jnp.matmul(Y, ZY, precision=hp),
                jnp.matmul(ZY, Z, precision=hp))
    ZY = 0.5 * jnp.matmul(Y, i3 - jnp.matmul(Z, Y, precision=hp), precision=hp)
    sqrt_cov = ZY * jnp.sqrt(normA)[:, None, None]                # (B, C, C)

    d = jnp.mean(sqrt_cov, axis=1)                                # (B, C)
    h = jax.nn.relu(jnp.matmul(d, w1.T, precision=hp) + b1)       # (B, mid)
    y = jax.nn.sigmoid(jnp.matmul(h, w2.T, precision=hp) + b2)    # (B, C)
    return (y[:, :, None, None] * x).astype(x.dtype)


if __name__ == "__main__":
    B, C, H, W = 2, 32, 16, 16
    reduction = 8
    mid = C // reduction

    key = jax.random.PRNGKey(0)
    kx, k1, k2, k3, k4 = jax.random.split(key, 5)
    x = jax.random.normal(kx, (B, C, H, W), dtype=jnp.float32)
    # conv_du parameters (1x1 convs flattened to (out, in) matrices + biases)
    w1 = 0.1 * jax.random.normal(k1, (mid, C), dtype=jnp.float32)
    b1 = 0.1 * jax.random.normal(k2, (mid,), dtype=jnp.float32)
    w2 = 0.1 * jax.random.normal(k3, (C, mid), dtype=jnp.float32)
    b2 = 0.1 * jax.random.normal(k4, (C,), dtype=jnp.float32)

    out = jax.block_until_ready(soca_forward(x, w1, b1, w2, b2))
    ref = jax.block_until_ready(soca_ref(x, w1, b1, w2, b2))

    assert out.shape == (B, C, H, W), out.shape
    assert jnp.allclose(out, ref, atol=1e-3, rtol=1e-3), \
        float(jnp.max(jnp.abs(out - ref)))

    print("KERNEL_OK")
</pallas_src>

<mosaic_0001>
module attributes {stable_mosaic.version = 11 : i64} {
  func.func @_soca_stats_kernel(%arg0: i32, %arg1: i32, %arg2: memref<1x32x256xf32, #tpu.memory_space<vmem>>, %arg3: memref<4x32xf32, #tpu.memory_space<vmem>>, %arg4: memref<4x1xf32, #tpu.memory_space<vmem>>, %arg5: memref<32x4xf32, #tpu.memory_space<vmem>>, %arg6: memref<32x1xf32, #tpu.memory_space<vmem>>, %arg7: memref<1x32x1xf32, #tpu.memory_space<vmem>>, %arg8: memref<32x32xf32, #tpu.memory_space<vmem>>, %arg9: memref<32x1xf32, #tpu.memory_space<vmem>>) attributes {dimension_semantics = [#tpu.dimension_semantics<parallel>, #tpu.dimension_semantics<arbitrary>], iteration_bounds = array<i64: 2, 1>, scalar_prefetch = 0 : i64, scratch_operands = 2 : i64, tpu.core_type = #tpu.core_type<tc>, window_params = [{transform_indices = @transform_0, window_bounds = array<i64: 1, 32, 256>}, {pipeline_mode = #tpu.pipeline_mode<synchronous>, transform_indices = @transform_1, window_bounds = array<i64: 4, 32>}, {pipeline_mode = #tpu.pipeline_mode<synchronous>, transform_indices = @transform_2, window_bounds = array<i64: 4, 1>}, {pipeline_mode = #tpu.pipeline_mode<synchronous>, transform_indices = @transform_3, window_bounds = array<i64: 32, 4>}, {pipeline_mode = #tpu.pipeline_mode<synchronous>, transform_indices = @transform_4, window_bounds = array<i64: 32, 1>}, {transform_indices = @transform_5, window_bounds = array<i64: 1, 32, 1>}]} {
    %c0_i32 = arith.constant 0 : i32
    %0 = arith.cmpi eq, %arg1, %c0_i32 : i32
    %1 = arith.extui %0 : i1 to i32
    %c0_i32_0 = arith.constant 0 : i32
    %2 = arith.cmpi ne, %1, %c0_i32_0 : i32
    scf.if %2 {
      %cst_15 = arith.constant 0.000000e+00 : f32
      %17 = vector.broadcast %cst_15 : f32 to vector<32x32xf32>
      %c0_16 = arith.constant 0 : index
      %c0_17 = arith.constant 0 : index
      %18 = vector.load %arg8[%c0_16, %c0_17] : memref<32x32xf32, #tpu.memory_space<vmem>>, vector<32x32xf32>
      tpu.vector_store %arg8[%c0_16, %c0_17], %17 {strides = array<i32>} : memref<32x32xf32, #tpu.memory_space<vmem>>, vector<32x32xf32>,
      %cst_18 = arith.constant 0.000000e+00 : f32
      %19 = vector.broadcast %cst_18 : f32 to vector<32x1xf32>
      %c0_19 = arith.constant 0 : index
      %c0_20 = arith.constant 0 : index
      %20 = vector.load %arg9[%c0_19, %c0_20] : memref<32x1xf32, #tpu.memory_space<vmem>>, vector<32x1xf32>
      tpu.vector_store %arg9[%c0_19, %c0_20], %19 {strides = array<i32>} : memref<32x1xf32, #tpu.memory_space<vmem>>, vector<32x1xf32>,
    } else {
    }
    %c0 = arith.constant 0 : index
    %c0_1 = arith.constant 0 : index
    %c0_2 = arith.constant 0 : index
    %3 = vector.load %arg2[%c0, %c0_1, %c0_2] : memref<1x32x256xf32, #tpu.memory_space<vmem>>, vector<1x32x256xf32>
    %4 = vector.shape_cast %3 : vector<1x32x256xf32> to vector<32x256xf32>
    %c0_3 = arith.constant 0 : index
    %c0_4 = arith.constant 0 : index
    %5 = vector.load %arg8[%c0_3, %c0_4] : memref<32x32xf32, #tpu.memory_space<vmem>>, vector<32x32xf32>
    %cst = arith.constant dense<0.000000e+00> : vector<32x32xf32>
    %6 = tpu.matmul %4, %4, %cst {dimension_numbers = #tpu.dot_dimension_numbers<[1], [1], [0], [0], [0, 0, 1, 0], [], []>} : vector<32x256xf32>, vector<32x256xf32>, vector<32x32xf32> -> vector<32x32xf32>
    %7 = arith.addf %5, %6 : vector<32x32xf32>
    %c0_5 = arith.constant 0 : index
    %c0_6 = arith.constant 0 : index
    %8 = vector.load %arg8[%c0_5, %c0_6] : memref<32x32xf32, #tpu.memory_space<vmem>>, vector<32x32xf32>
    tpu.vector_store %arg8[%c0_5, %c0_6], %7 {strides = array<i32>} : memref<32x32xf32, #tpu.memory_space<vmem>>, vector<32x32xf32>,
    %cst_7 = arith.constant 1.000000e+00 : f32
    %9 = vector.broadcast %cst_7 : f32 to vector<256x1xf32>
    %c0_8 = arith.constant 0 : index
    %c0_9 = arith.constant 0 : index
    %10 = vector.load %arg9[%c0_8, %c0_9] : memref<32x1xf32, #tpu.memory_space<vmem>>, vector<32x1xf32>
    %cst_10 = arith.constant dense<0.000000e+00> : vector<32x1xf32>
    %11 = tpu.matmul %4, %9, %cst_10 {dimension_numbers = #tpu.dot_dimension_numbers<[1], [0], [0], [1], [0, 0, 1, 1], [], []>} : vector<32x256xf32>, vector<256x1xf32>, vector<32x1xf32> -> vector<32x1xf32>
    %12 = arith.addf %10, %11 : vector<32x1xf32>
    %c0_11 = arith.constant 0 : index
    %c0_12 = arith.constant 0 : index
    %13 = vector.load %arg9[%c0_11, %c0_12] : memref<32x1xf32, #tpu.memory_space<vmem>>, vector<32x1xf32>
    tpu.vector_store %arg9[%c0_11, %c0_12], %12 {strides = array<i32>} : memref<32x1xf32, #tpu.memory_space<vmem>>, vector<32x1xf32>,
    %c0_i32_13 = arith.constant 0 : i32
    %14 = arith.cmpi eq, %arg1, %c0_i32_13 : i32
    %15 = arith.extui %14 : i1 to i32
    %c0_i32_14 = arith.constant 0 : i32
    %16 = arith.cmpi ne, %15, %c0_i32_14 : i32
    scf.if %16 {
      %c0_15 = arith.constant 0 : index
      %c0_16 = arith.constant 0 : index
      %17 = vector.load %arg9[%c0_15, %c0_16] : memref<32x1xf32, #tpu.memory_space<vmem>>, vector<32x1xf32>
      %c0_17 = arith.constant 0 : index
      %c0_18 = arith.constant 0 : index
      %18 = vector.load %arg9[%c0_17, %c0_18] : memref<32x1xf32, #tpu.memory_space<vmem>>, vector<32x1xf32>
      %cst_19 = arith.constant dense<0.000000e+00> : vector<32x32xf32>
      %19 = tpu.matmul %17, %18, %cst_19 {dimension_numbers = #tpu.dot_dimension_numbers<[1], [1], [0], [0], [0, 0, 1, 0], [], []>} : vector<32x1xf32>, vector<32x1xf32>, vector<32x32xf32> -> vector<32x32xf32>
      %c0_20 = arith.constant 0 : index
      %c0_21 = arith.constant 0 : index
      %20 = vector.load %arg8[%c0_20, %c0_21] : memref<32x32xf32, #tpu.memory_space<vmem>>, vector<32x32xf32>
      %cst_22 = arith.constant 3.906250e-03 : f32
      %21 = vector.broadcast %cst_22 : f32 to vector<32x32xf32>
      %22 = arith.mulf %20, %21 : vector<32x32xf32>
      %cst_23 = arith.constant 1.52587891E-5 : f32
      %23 = vector.broadcast %cst_23 : f32 to vector<32x32xf32>
      %24 = arith.mulf %19, %23 : vector<32x32xf32>
      %25 = arith.subf %22, %24 : vector<32x32xf32>
      %26 = tpu.iota {dimensions = array<i32: 0>} : vector<32x32xi32>
      %27 = tpu.iota {dimensions = array<i32: 1>} : vector<32x32xi32>
      %28 = arith.cmpi eq, %26, %27 : vector<32x32xi32>
      %cst_24 = arith.constant 1.000000e+00 : f32
      %cst_25 = arith.constant 0.000000e+00 : f32
      %29 = vector.broadcast %cst_24 : f32 to vector<32x32xf32>
      %30 = vector.broadcast %cst_25 : f32 to vector<32x32xf32>
      %31 = arith.select %28, %29, %30 : vector<32x32xi1>, vector<32x32xf32>
      %cst_26 = arith.constant 3.000000e+00 : f32
      %32 = vector.broadcast %cst_26 : f32 to vector<32x32xf32>
      %33 = arith.mulf %32, %31 : vector<32x32xf32>
      %34 = arith.mulf %25, %31 : vector<32x32xf32>
      %35 = vector.shape_cast %34 : vector<32x32xf32> to vector<1x32x32xf32>
      %cst_27 = arith.constant dense<0.000000e+00> : vector<1xf32>
      %36 = vector.multi_reduction <add>, %35, %cst_27 [1, 2] : vector<1x32x32xf32> to vector<1xf32>
      %37 = vector.shape_cast %36 : vector<1xf32> to vector<1x1x1xf32>
      %38 = vector.extract %37[0, 0, 0] : f32 from vector<1x1x1xf32>
      %39 = vector.broadcast %38 : f32 to vector<32x32xf32>
      %40 = arith.divf %25, %39 : vector<32x32xf32>
      %41 = arith.subf %33, %40 : vector<32x32xf32>
      %cst_28 = arith.constant 5.000000e-01 : f32
      %42 = vector.broadcast %cst_28 : f32 to vector<32x32xf32>
      %43 = arith.mulf %42, %41 : vector<32x32xf32>
      %cst_29 = arith.constant dense<0.000000e+00> : vector<32x32xf32>
      %44 = tpu.matmul %40, %43, %cst_29 {dimension_numbers = #tpu.dot_dimension_numbers<[1], [0], [0], [1], [0, 0, 1, 1], [], []>} : vector<32x32xf32>, vector<32x32xf32>, vector<32x32xf32> -> vector<32x32xf32>
      %cst_30 = arith.constant dense<0.000000e+00> : vector<32x32xf32>
      %45 = tpu.matmul %43, %44, %cst_30 {dimension_numbers = #tpu.dot_dimension_numbers<[1], [0], [0], [1], [0, 0, 1, 1], [], []>} : vector<32x32xf32>, vector<32x32xf32>, vector<32x32xf32> -> vector<32x32xf32>
      %46 = arith.subf %33, %45 : vector<32x32xf32>
      %cst_31 = arith.constant 5.000000e-01 : f32
      %47 = vector.broadcast %cst_31 : f32 to vector<32x32xf32>
      %48 = arith.mulf %47, %46 : vector<32x32xf32>
      %cst_32 = arith.constant dense<0.000000e+00> : vector<32x32xf32>
      %49 = tpu.matmul %44, %48, %cst_32 {dimension_numbers = #tpu.dot_dimension_numbers<[1], [0], [0], [1], [0, 0, 1, 1], [], []>} : vector<32x32xf32>, vector<32x32xf32>, vector<32x32xf32> -> vector<32x32xf32>
      %cst_33 = arith.constant dense<0.000000e+00> : vector<32x32xf32>
      %50 = tpu.matmul %48, %43, %cst_33 {dimension_numbers = #tpu.dot_dimension_numbers<[1], [0], [0], [1], [0, 0, 1, 1], [], []>} : vector<32x32xf32>, vector<32x32xf32>, vector<32x32xf32> -> vector<32x32xf32>
      %cst_34 = arith.constant dense<0.000000e+00> : vector<32x32xf32>
      %51 = tpu.matmul %50, %49, %cst_34 {dimension_numbers = #tpu.dot_dimension_numbers<[1], [0], [0], [1], [0, 0, 1, 1], [], []>} : vector<32x32xf32>, vector<32x32xf32>, vector<32x32xf32> -> vector<32x32xf32>
      %52 = arith.subf %33, %51 : vector<32x32xf32>
      %cst_35 = arith.constant 5.000000e-01 : f32
      %53 = vector.broadcast %cst_35 : f32 to vector<32x32xf32>
      %54 = arith.mulf %53, %52 : vector<32x32xf32>
      %cst_36 = arith.constant dense<0.000000e+00> : vector<32x32xf32>
      %55 = tpu.matmul %49, %54, %cst_36 {dimension_numbers = #tpu.dot_dimension_numbers<[1], [0], [0], [1], [0, 0, 1, 1], [], []>} : vector<32x32xf32>, vector<32x32xf32>, vector<32x32xf32> -> vector<32x32xf32>
      %cst_37 = arith.constant dense<0.000000e+00> : vector<32x32xf32>
      %56 = tpu.matmul %54, %50, %cst_37 {dimension_numbers = #tpu.dot_dimension_numbers<[1], [0], [0], [1], [0, 0, 1, 1], [], []>} : vector<32x32xf32>, vector<32x32xf32>, vector<32x32xf32> -> vector<32x32xf32>
      %cst_38 = arith.constant dense<0.000000e+00> : vector<32x32xf32>
      %57 = tpu.matmul %56, %55, %cst_38 {dimension_numbers = #tpu.dot_dimension_numbers<[1], [0], [0], [1], [0, 0, 1, 1], [], []>} : vector<32x32xf32>, vector<32x32xf32>, vector<32x32xf32> -> vector<32x32xf32>
      %58 = arith.subf %33, %57 : vector<32x32xf32>
      %cst_39 = arith.constant 5.000000e-01 : f32
      %59 = vector.broadcast %cst_39 : f32 to vector<32x32xf32>
      %60 = arith.mulf %59, %58 : vector<32x32xf32>
      %cst_40 = arith.constant dense<0.000000e+00> : vector<32x32xf32>
      %61 = tpu.matmul %55, %60, %cst_40 {dimension_numbers = #tpu.dot_dimension_numbers<[1], [0], [0], [1], [0, 0, 1, 1], [], []>} : vector<32x32xf32>, vector<32x32xf32>, vector<32x32xf32> -> vector<32x32xf32>
      %cst_41 = arith.constant dense<0.000000e+00> : vector<32x32xf32>
      %62 = tpu.matmul %60, %56, %cst_41 {dimension_numbers = #tpu.dot_dimension_numbers<[1], [0], [0], [1], [0, 0, 1, 1], [], []>} : vector<32x32xf32>, vector<32x32xf32>, vector<32x32xf32> -> vector<32x32xf32>
      %cst_42 = arith.constant dense<0.000000e+00> : vector<32x32xf32>
      %63 = tpu.matmul %62, %61, %cst_42 {dimension_numbers = #tpu.dot_dimension_numbers<[1], [0], [0], [1], [0, 0, 1, 1], [], []>} : vector<32x32xf32>, vector<32x32xf32>, vector<32x32xf32> -> vector<32x32xf32>
      %64 = arith.subf %33, %63 : vector<32x32xf32>
      %cst_43 = arith.constant dense<0.000000e+00> : vector<32x32xf32>
      %65 = tpu.matmul %61, %64, %cst_43 {dimension_numbers = #tpu.dot_dimension_numbers<[1], [0], [0], [1], [0, 0, 1, 1], [], []>} : vector<32x32xf32>, vector<32x32xf32>, vector<32x32xf32> -> vector<32x32xf32>
      %cst_44 = arith.constant 5.000000e-01 : f32
      %66 = vector.broadcast %cst_44 : f32 to vector<32x32xf32>
      %67 = arith.mulf %66, %65 : vector<32x32xf32>
      %68 = math.sqrt %38 : f32
      %69 = vector.broadcast %68 : f32 to vector<32x32xf32>
      %70 = arith.mulf %67, %69 : vector<32x32xf32>
      %cst_45 = arith.constant 3.125000e-02 : f32
      %71 = vector.broadcast %cst_45 : f32 to vector<32x1xf32>
      %cst_46 = arith.constant dense<0.000000e+00> : vector<32x1xf32>
      %72 = tpu.matmul %70, %71, %cst_46 {dimension_numbers = #tpu.dot_dimension_numbers<[1], [0], [0], [1], [0, 0, 1, 1], [], []>} : vector<32x32xf32>, vector<32x1xf32>, vector<32x1xf32> -> vector<32x1xf32>
      %c0_47 = arith.constant 0 : index
      %c0_48 = arith.constant 0 : index
      %73 = vector.load %arg3[%c0_47, %c0_48] : memref<4x32xf32, #tpu.memory_space<vmem>>, vector<4x32xf32>
      %cst_49 = arith.constant dense<0.000000e+00> : vector<4x1xf32>
      %74 = tpu.matmul %73, %72, %cst_49 {dimension_numbers = #tpu.dot_dimension_numbers<[1], [0], [0], [1], [0, 0, 1, 1], [], []>} : vector<4x32xf32>, vector<32x1xf32>, vector<4x1xf32> -> vector<4x1xf32>
      %c0_50 = arith.constant 0 : index
      %c0_51 = arith.constant 0 : index
      %75 = vector.load %arg4[%c0_50, %c0_51] : memref<4x1xf32, #tpu.memory_space<vmem>>, vector<4x1xf32>
      %76 = arith.addf %74, %75 : vector<4x1xf32>
      %cst_52 = arith.constant 0.000000e+00 : f32
      %77 = vector.broadcast %cst_52 : f32 to vector<4x1xf32>
      %78 = arith.maximumf %76, %77 : vector<4x1xf32>
      %c0_53 = arith.constant 0 : index
      %c0_54 = arith.constant 0 : index
      %79 = vector.load %arg5[%c0_53, %c0_54] : memref<32x4xf32, #tpu.memory_space<vmem>>, vector<32x4xf32>
      %cst_55 = arith.constant dense<0.000000e+00> : vector<32x1xf32>
      %80 = tpu.matmul %79, %78, %cst_55 {dimension_numbers = #tpu.dot_dimension_numbers<[1], [0], [0], [1], [0, 0, 1, 1], [], []>} : vector<32x4xf32>, vector<4x1xf32>, vector<32x1xf32> -> vector<32x1xf32>
      %c0_56 = arith.constant 0 : index
      %c0_57 = arith.constant 0 : index
      %81 = vector.load %arg6[%c0_56, %c0_57] : memref<32x1xf32, #tpu.memory_space<vmem>>, vector<32x1xf32>
      %82 = arith.addf %80, %81 : vector<32x1xf32>
      %83 = arith.negf %82 : vector<32x1xf32>
      %84 = math.exp %83 : vector<32x1xf32>
      %cst_58 = arith.constant 1.000000e+00 : f32
      %85 = vector.broadcast %cst_58 : f32 to vector<32x1xf32>
      %86 = arith.addf %85, %84 : vector<32x1xf32>
      %87 = arith.divf %85, %86 : vector<32x1xf32>
      %c0_59 = arith.constant 0 : index
      %c0_60 = arith.constant 0 : index
      %c0_61 = arith.constant 0 : index
      %88 = vector.load %arg7[%c0_59, %c0_60, %c0_61] : memref<1x32x1xf32, #tpu.memory_space<vmem>>, vector<1x32x1xf32>
      %89 = vector.shape_cast %88 : vector<1x32x1xf32> to vector<32x1xf32>
      %90 = vector.shape_cast %87 : vector<32x1xf32> to vector<1x32x1xf32>
      tpu.vector_store %arg7[%c0_59, %c0_60, %c0_61], %90 {strides = array<i32>} : memref<1x32x1xf32, #tpu.memory_space<vmem>>, vector<1x32x1xf32>,
    } else {
    }
    return
  }
  func.func @transform_0(%arg0: i32, %arg1: i32) -> (i32, i32, i32) {
    %c0_i32 = arith.constant 0 : i32
    %c0_i32_0 = arith.constant 0 : i32
    return %arg0, %c0_i32, %arg1 : i32, i32, i32
  }
  func.func @transform_1(%arg0: i32, %arg1: i32) -> (i32, i32) {
    %c0_i32 = arith.constant 0 : i32
    %c0_i32_0 = arith.constant 0 : i32
    %c0_i32_1 = arith.constant 0 : i32
    return %c0_i32, %c0_i32_0 : i32, i32
  }
  func.func @transform_2(%arg0: i32, %arg1: i32) -> (i32, i32) {
    %c0_i32 = arith.constant 0 : i32
    %c0_i32_0 = arith.constant 0 : i32
    %c0_i32_1 = arith.constant 0 : i32
    return %c0_i32, %c0_i32_0 : i32, i32
  }
  func.func @transform_3(%arg0: i32, %arg1: i32) -> (i32, i32) {
    %c0_i32 = arith.constant 0 : i32
    %c0_i32_0 = arith.constant 0 : i32
    %c0_i32_1 = arith.constant 0 : i32
    return %c0_i32, %c0_i32_0 : i32, i32
  }
  func.func @transform_4(%arg0: i32, %arg1: i32) -> (i32, i32) {
    %c0_i32 = arith.constant 0 : i32
    %c0_i32_0 = arith.constant 0 : i32
    %c0_i32_1 = arith.constant 0 : i32
    return %c0_i32, %c0_i32_0 : i32, i32
  }
  func.func @transform_5(%arg0: i32, %arg1: i32) -> (i32, i32, i32) {
    %c0_i32 = arith.constant 0 : i32
    %c0_i32_0 = arith.constant 0 : i32
    %c0_i32_1 = arith.constant 0 : i32
    return %arg0, %c0_i32, %c0_i32_0 : i32, i32, i32
  }
}

</mosaic_0001>

<llo_original>
// kernel: tpu_custom_call.1
$region0: #{tpu_custom_call.1}
  #allocation0 [shape = 'u32[]', space=smem, size = 0x4, offset = 0x4, fixed_abs, tag = 'smem constant byte address 0x4 - core index']
  #allocation1 [shape = 'u32[144,128]{1,0:T(1,128)}', space=vmem, size = 0x12000, scoped, tag = 'internal scratch']
  #allocation2 [shape = 'f32[32,32]{1,0:T(8,128)}', space=vmem, size = 0x4000, scoped, tag = 'scratch operand']
  #allocation3 [shape = 'f32[32,1]{1,0:T(8,128)}', space=vmem, size = 0x4000, scoped, tag = 'scratch operand']
  %s0 = inlined_call_operand.hbm [shape: f32[2,32,256], index: 0, kind: input, shape index: {}]
  %s1 = inlined_call_operand.vmem [shape: f32[4,32], index: 1, kind: input, shape index: {}]
  %s2 = inlined_call_operand.vmem [shape: f32[4,1], index: 2, kind: input, shape index: {}]
  %s3 = inlined_call_operand.vmem [shape: f32[32,4], index: 3, kind: input, shape index: {}]
  %s4 = inlined_call_operand.vmem [shape: f32[32,1], index: 4, kind: input, shape index: {}]
  %s5 = inlined_call_operand.vmem [shape: f32[2,32,1], index: 5, kind: output, shape index: {}]
  %s6 = sld [smem:[#allocation0]]
  $region65: #{tpu_custom_call.1} parent=0
    _
  %s8 = ssub.s32 1, %s6
  %s9 = scalar_select 0, %s8, %s6
  $region1: #{tpu_custom_call.1} parent=0
    #allocation4 [shape = 'u8[65536]{0}', space=vmem, size = 0x10000, scoped, tag = 'input window, operand 0']
    #allocation5 [shape = 's32[2]{0}', space=sflag, size = 0x8, scoped, tag = 'scoped memory for tpu_custom_call.1']
    %10 = vsyncpa [#allocation5], 0
    %s11 = scalar_lea.sflag [#allocation5], 1
    %12 = vsyncpa %s11, 0
    loop: start=0, step=1, limit=4
    $region2: #{tpu_custom_call.1} parent=1 // loop_pre_header
      _
    $region3: #{tpu_custom_call.1} parent=1 // loop_header
      %s14 = sphi 0, %s18
      %p15 = scmp.ge.s32.totalorder %s14, 4
      %s21 = sphi 0, %s33
      %s22 = sphi 0, %s29
      %s23 = sphi 0, %s21
      %s24 = sphi 0, %s22
      %s25 = sphi 0, %s23
      %s26 = sphi 0, %s24
      %s38 = sphi 0, %s40
      %s41 = sphi 0, %s38
      %s42 = sphi 0, %s41
      %s58 = sphi 0, %s42
      %s62 = sphi 0, %s62
      %s64 = sphi 0, %s62
      %s65 = sphi 0, %s64
      %s79 = sphi 0, %s65
      %s83 = sphi 0, %s83
      %s85 = sphi 0, %s83
      %s86 = sphi 0, %s85
      %s100 = sphi 0, %s86
      %s104 = sphi 0, %s104
      %s106 = sphi 0, %s104
      %s107 = sphi 0, %s106
      %s121 = sphi 0, %s107
      %s125 = sphi 0, %s125
      %s127 = sphi 0, %s125
      %s128 = sphi 0, %s127
      %s142 = sphi 0, %s128
      %s148 = sphi 0, %s150
      %s151 = sphi 0, %s148
      %s152 = sphi 0, %s151
      %s168 = sphi 0, %s152
    $region4: #{tpu_custom_call.1} parent=1 // loop_header_branch
      %17 = sbr.rel (%p15) target = $region8
    $region5: #{tpu_custom_call.1} parent=1 // loop_body
      %s19 = ssub.s32 %s14, 1
      %s20 = ssub.s32 %s14, 2
      %s27 = sadd.s32 1, %s22
      %p28 = scmp.ge.s32.totalorder %s27, 1
      %s29 = scalar_select %p28, 0, %s27
      %s30 = sadd.s32 1, %s21
      %s31 = scalar_select %p28, %s30, %s21
      %p32 = scmp.ge.s32.totalorder %s31, 2
      %s33 = scalar_select %p32, 0, %s31
      %s34 = ssub.s32 %s21, %s33
      %s35 = ssub.s32 %s22, %s29
      %s36 = sor.u32 %s34, %s35
      %p37 = scmp.eq.s32.totalorder %s36, 0
      %s39 = sadd.s32 %s38, 1
      %s40 = scalar_select %p37, %s38, %s39
      %p43 = pneg %p37
      %p44 = scmp.eq.s32.totalorder %s14, 1
      %p45 = por %p43, %p44
      %p46 = scmp.ne.s32.totalorder %s38, %s41
      %p47 = scmp.eq.s32.totalorder %s14, 0
      %p48 = por %p46, %p47
      %p49 = scmp.ne.s32.totalorder %s38, %s41
      %p50 = scmp.eq.s32.totalorder %s19, 1
      %p51 = por %p49, %p50
      %p52 = scmp.ne.s32.totalorder %s41, %s42
      %p53 = scmp.eq.s32.totalorder %s19, 0
      %p54 = por %p52, %p53
      %p55 = scmp.ne.s32.totalorder %s41, %s42
      %p56 = scmp.eq.s32.totalorder %s20, 1
      %p57 = por %p55, %p56
      %p59 = scmp.ne.s32.totalorder %s42, %s58
      %p60 = scmp.eq.s32.totalorder %s20, 0
      %p61 = por %p59, %p60
      %s63 = sadd.s32 %s62, 1
      %p66 = scmp.eq.s32.totalorder %s14, 1
      %p67 = scmp.ne.s32.totalorder %s62, %s64
      %p68 = scmp.eq.s32.totalorder %s14, 0
      %p69 = por %p67, %p68
      %p70 = scmp.ne.s32.totalorder %s62, %s64
      %p71 = scmp.eq.s32.totalorder %s19, 1
      %p72 = por %p70, %p71
      %p73 = scmp.ne.s32.totalorder %s64, %s65
      %p74 = scmp.eq.s32.totalorder %s19, 0
      %p75 = por %p73, %p74
      %p76 = scmp.ne.s32.totalorder %s64, %s65
      %p77 = scmp.eq.s32.totalorder %s20, 1
      %p78 = por %p76, %p77
      %p80 = scmp.ne.s32.totalorder %s65, %s79
      %p81 = scmp.eq.s32.totalorder %s20, 0
      %p82 = por %p80, %p81
      %s84 = sadd.s32 %s83, 1
      %p87 = scmp.eq.s32.totalorder %s14, 1
      %p88 = scmp.ne.s32.totalorder %s83, %s85
      %p89 = scmp.eq.s32.totalorder %s14, 0
      %p90 = por %p88, %p89
      %p91 = scmp.ne.s32.totalorder %s83, %s85
      %p92 = scmp.eq.s32.totalorder %s19, 1
      %p93 = por %p91, %p92
      %p94 = scmp.ne.s32.totalorder %s85, %s86
      %p95 = scmp.eq.s32.totalorder %s19, 0
      %p96 = por %p94, %p95
      %p97 = scmp.ne.s32.totalorder %s85, %s86
      %p98 = scmp.eq.s32.totalorder %s20, 1
      %p99 = por %p97, %p98
      %p101 = scmp.ne.s32.totalorder %s86, %s100
      %p102 = scmp.eq.s32.totalorder %s20, 0
      %p103 = por %p101, %p102
      %s105 = sadd.s32 %s104, 1
      %p108 = scmp.eq.s32.totalorder %s14, 1
      %p109 = scmp.ne.s32.totalorder %s104, %s106
      %p110 = scmp.eq.s32.totalorder %s14, 0
      %p111 = por %p109, %p110
      %p112 = scmp.ne.s32.totalorder %s104, %s106
      %p113 = scmp.eq.s32.totalorder %s19, 1
      %p114 = por %p112, %p113
      %p115 = scmp.ne.s32.totalorder %s106, %s107
      %p116 = scmp.eq.s32.totalorder %s19, 0
      %p117 = por %p115, %p116
      %p118 = scmp.ne.s32.totalorder %s106, %s107
      %p119 = scmp.eq.s32.totalorder %s20, 1
      %p120 = por %p118, %p119
      %p122 = scmp.ne.s32.totalorder %s107, %s121
      %p123 = scmp.eq.s32.totalorder %s20, 0
      %p124 = por %p122, %p123
      %s126 = sadd.s32 %s125, 1
      %p129 = scmp.eq.s32.totalorder %s14, 1
      %p130 = scmp.ne.s32.totalorder %s125, %s127
      %p131 = scmp.eq.s32.totalorder %s14, 0
      %p132 = por %p130, %p131
      %p133 = scmp.ne.s32.totalorder %s125, %s127
      %p134 = scmp.eq.s32.totalorder %s19, 1
      %p135 = por %p133, %p134
      %p136 = scmp.ne.s32.totalorder %s127, %s128
      %p137 = scmp.eq.s32.totalorder %s19, 0
      %p138 = por %p136, %p137
      %p139 = scmp.ne.s32.totalorder %s127, %s128
      %p140 = scmp.eq.s32.totalorder %s20, 1
      %p141 = por %p139, %p140
      %p143 = scmp.ne.s32.totalorder %s128, %s142
      %p144 = scmp.eq.s32.totalorder %s20, 0
      %p145 = por %p143, %p144
      %s146 = ssub.s32 %s21, %s33
      %p147 = scmp.eq.s32.totalorder %s146, 0
      %s149 = sadd.s32 %s148, 1
      %s150 = scalar_select %p147, %s148, %s149
      %p153 = pneg %p147
      %p154 = scmp.eq.s32.totalorder %s14, 1
      %p155 = por %p153, %p154
      %p156 = scmp.ne.s32.totalorder %s148, %s151
      %p157 = scmp.eq.s32.totalorder %s14, 0
      %p158 = por %p156, %p157
      %p159 = scmp.ne.s32.totalorder %s148, %s151
      %p160 = scmp.eq.s32.totalorder %s19, 1
      %p161 = por %p159, %p160
      %p162 = scmp.ne.s32.totalorder %s151, %s152
      %p163 = scmp.eq.s32.totalorder %s19, 0
      %p164 = por %p162, %p163
      %p165 = scmp.ne.s32.totalorder %s151, %s152
      %p166 = scmp.eq.s32.totalorder %s20, 1
      %p167 = por %p165, %p166
      %p169 = scmp.ne.s32.totalorder %s152, %s168
      %p170 = scmp.eq.s32.totalorder %s20, 0
      %p171 = por %p169, %p170
      %p172 = scmp.le.s32.totalorder 1, %s14
      %p173 = scmp.lt.s32.totalorder %s14, 3
      %p174 = pnand %p172, %p173
      %p175 = pneg %p174
      // Predicated region
      $region9: #{tpu_custom_call.1} parent=5 // pred_check
        _
      $region10: #{tpu_custom_call.1} parent=5 // pred_check_branch
        %177 = sbr.rel (%p174) target = $region12
      $region11: #{tpu_custom_call.1} parent=5 // pred_region
        %s178 = ssub.s32 %s14, 1
        // Predicated region
        $region13: #{tpu_custom_call.1} parent=11 // pred_check
          %p179 = pneg %p75
        $region14: #{tpu_custom_call.1} parent=11 // pred_check_branch
          %181 = sbr.rel (%p179) target = $region16
        $region15: #{tpu_custom_call.1} parent=11 // pred_region
          _
        $region16: #{tpu_custom_call.1} parent=11 // pred_fallthru
          _
        // Predicated region
        $region17: #{tpu_custom_call.1} parent=11 // pred_check
          %p182 = pneg %p96
        $region18: #{tpu_custom_call.1} parent=11 // pred_check_branch
          %184 = sbr.rel (%p182) target = $region20
        $region19: #{tpu_custom_call.1} parent=11 // pred_region
          _
        $region20: #{tpu_custom_call.1} parent=11 // pred_fallthru
          _
        // Predicated region
        $region21: #{tpu_custom_call.1} parent=11 // pred_check
          %p185 = pneg %p117
        $region22: #{tpu_custom_call.1} parent=11 // pred_check_branch
          %187 = sbr.rel (%p185) target = $region24
        $region23: #{tpu_custom_call.1} parent=11 // pred_region
          _
        $region24: #{tpu_custom_call.1} parent=11 // pred_fallthru
          _
        // Predicated region
        $region25: #{tpu_custom_call.1} parent=11 // pred_check
          %p188 = pneg %p138
        $region26: #{tpu_custom_call.1} parent=11 // pred_check_branch
          %190 = sbr.rel (%p188) target = $region28
        $region27: #{tpu_custom_call.1} parent=11 // pred_region
          _
        $region28: #{tpu_custom_call.1} parent=11 // pred_fallthru
          _
      $region12: #{tpu_custom_call.1} parent=5 // pred_fallthru
        _
      %p191 = scmp.lt.s32.totalorder %s14, 2
      // Predicated region
      $region29: #{tpu_custom_call.1} parent=5 // pred_check
        %p192 = pneg %p191
      $region30: #{tpu_custom_call.1} parent=5 // pred_check_branch
        %194 = sbr.rel (%p192) target = $region32
      $region31: #{tpu_custom_call.1} parent=5 // pred_region
        // Predicated region
        $region33: #{tpu_custom_call.1} parent=31 // pred_check
          %p195 = pneg %p48
        $region34: #{tpu_custom_call.1} parent=31 // pred_check_branch
          %197 = sbr.rel (%p195) target = $region36
        $region35: #{tpu_custom_call.1} parent=31 // pred_region
          %s198 = sand.u32 %s38, 1
          %s199 = scalar_lea.sflag [#allocation5], %s198
          %s200 = sand.u32 %s38, 1
          %s201 = smul.addr %s200, 64
          %s202 = scalar_lea.vmem [#allocation4], %s201
          %s203 = smul.u32 2, %s22
          %s205 = ssub.s32 1024, 1024
          %206 = vsyncadd %s199, %s205
          %s207 = smul.addr %s21, 8
          %s208 = sadd.s32 %s203, %s207
          %s209 = smul.addr %s208, 128
          %s210 = scalar_lea.hbm %s0, %s209
          %s211 = sshll.u32 %s202, 4
          %s212 = int_to_ptr.vmem [resolvable:$true] %s211
          %217 = dma.hbm_to_vmem [thread:$0]  %s210, 1024, %s212, %s199, 256, 256, 16
        $region36: #{tpu_custom_call.1} parent=31 // pred_fallthru
          _
      $region32: #{tpu_custom_call.1} parent=5 // pred_fallthru
        _
      %p218 = scmp.le.s32.totalorder 1, %s14
      %p219 = scmp.lt.s32.totalorder %s14, 3
      %p220 = pnand %p218, %p219
      %p221 = pneg %p220
      // Predicated region
      $region37: #{tpu_custom_call.1} parent=5 // pred_check
        _
      $region38: #{tpu_custom_call.1} parent=5 // pred_check_branch
        %223 = sbr.rel (%p220) target = $region40
      $region39: #{tpu_custom_call.1} parent=5 // pred_region
        %s224 = ssub.s32 %s14, 1
        %s225 = sand.u32 %s41, 1
        %s226 = scalar_lea.sflag [#allocation5], %s225
        %s227 = sand.u32 %s41, 1
        %s228 = smul.addr %s227, 64
        %s229 = scalar_lea.vmem [#allocation4], %s228
        // Predicated region
        $region41: #{tpu_custom_call.1} parent=39 // pred_check
          %p230 = pneg %p54
        $region42: #{tpu_custom_call.1} parent=39 // pred_check_branch
          %232 = sbr.rel (%p230) target = $region44
        $region43: #{tpu_custom_call.1} parent=39 // pred_region
          %233 = dma.done %s226, 1024
        $region44: #{tpu_custom_call.1} parent=39 // pred_fallthru
          _
        %s234 = sand.u32 %s41, 1
        %s235 = scalar_lea.sflag [#allocation5], %s234
        %s236 = sand.u32 %s41, 1
        %s237 = smul.addr %s236, 64
        %s238 = scalar_lea.vmem [#allocation4], %s237
        %p239 = pneg %p54
        %p240 = pneg %p51
        %p241 = pneg %p75
        %p242 = pneg %p72
        %p243 = pneg %p96
        %p244 = pneg %p93
        %p245 = pneg %p117
        %p246 = pneg %p114
        %p247 = pneg %p138
        %p248 = pneg %p135
        %p249 = pneg %p164
        %p250 = pneg %p161
        %p251 = scmp.lt.s32.totalorder %s23, 1
        %s252 = scalar_select %p251, %s23, 1
        %s253 = smul.addr %s252, 4
        %s254 = smul.addr %s253, 8
        %s255 = scalar_lea.vmem %s5, %s254
        %s256 = smul.u32 2, %s24
        %p257 = scmp.lt.s32.totalorder %s23, 1
        %s258 = scalar_select %p257, %s23, 1
        %s259 = smul.addr %s258, 4
        %s260 = smul.addr %s259, 8
        %s261 = scalar_lea.vmem %s5, %s260
        %p262 = scmp.eq.s32.totalorder %s24, 0
        // Predicated region
        $region45: #{tpu_custom_call.1} parent=39 // pred_check
          %p263 = pneg %p262
        $region46: #{tpu_custom_call.1} parent=39 // pred_check_branch
          %265 = sbr.rel (%p263) target = $region48
        $region47: #{tpu_custom_call.1} parent=39 // pred_region
          %vm266 = vcmask 261120
          %267 = vst.msk [vmem:[#allocation2] sm:$0xff] %vm266, 0.0
          %268 = vst.msk [vmem:[#allocation2 + $0x8] sm:$0xff] %vm266, 0.0
          %269 = vst.msk [vmem:[#allocation2 + $0x10] sm:$0xff] %vm266, 0.0
          %270 = vst.msk [vmem:[#allocation2 + $0x18] sm:$0xff] %vm266, 0.0
          %vm271 = vcmask 7168
          %272 = vst.msk [vmem:[#allocation3] sm:$0xff] %vm271, 0.0
          %273 = vst.msk [vmem:[#allocation3 + $0x8] sm:$0xff] %vm271, 0.0
          %274 = vst.msk [vmem:[#allocation3 + $0x10] sm:$0xff] %vm271, 0.0
          %275 = vst.msk [vmem:[#allocation3 + $0x18] sm:$0xff] %vm271, 0.0
        $region48: #{tpu_custom_call.1} parent=39 // pred_fallthru
          _
        %v276 = vld [vmem:[%s229] sm:$0xff]
        %v277 = vld [vmem:[%s229 + $0x8] sm:$0xff]
        %v278 = vld [vmem:[%s229 + $0x10] sm:$0xff]
        %v279 = vld [vmem:[%s229 + $0x18] sm:$0xff]
        %v280 = vld [vmem:[%s229 + $0x20] sm:$0xff]
        %v281 = vld [vmem:[%s229 + $0x28] sm:$0xff]
        %v282 = vld [vmem:[%s229 + $0x30] sm:$0xff]
        %v283 = vld [vmem:[%s229 + $0x38] sm:$0xff]
        %v284 = vld [vmem:[#allocation2] sm:$0xff]
        %v285 = vld [vmem:[#allocation2 + $0x8] sm:$0xff]
        %v286 = vld [vmem:[#allocation2 + $0x10] sm:$0xff]
        %v287 = vld [vmem:[#allocation2 + $0x18] sm:$0xff]
        %288 = vmatprep.subr.mxu0 0.0
        %289 = vmatpush1.xpose.msra.mxu0 0.0
        %290 = vmatprep.subr.mxu0 0.0
        %291 = vmatpush1.xpose.msra.mxu0 0.0
        %292 = vmatprep.subr.mxu0 0.0
        %293 = vmatpush1.xpose.msra.mxu0 0.0
        %294 = vmatprep.subr.mxu0 0.0
        %295 = vmatpush1.xpose.msra.mxu0 0.0
        %296 = vmatprep.subr.mxu0 0.0
        %297 = vmatpush1.xpose.msra.mxu0 0.0
        %298 = vmatprep.subr.mxu0 0.0
        %299 = vmatpush1.xpose.msra.mxu0 0.0
        %300 = vmatprep.subr.mxu0 0.0
        %301 = vmatpush1.xpose.msra.mxu0 0.0
        %302 = vmatprep.subr.mxu0 0.0
        %303 = vmatpush1.xpose.msra.mxu0 0.0
        %304 = vmatprep.subr.mxu0 0.0
        %305 = vmatpush1.xpose.msra.mxu0 0.0
        %306 = vmatprep.subr.mxu0 0.0
        %307 = vmatpush1.xpose.msra.mxu0 0.0
        %308 = vmatprep.subr.mxu0 0.0
        %309 = vmatpush1.xpose.msra.mxu0 0.0
        %310 = vmatprep.subr.mxu0 0.0
        %311 = vmatpush1.xpose.msra.mxu0 0.0
        %312 = vmatprep.subr.mxu0 %v283
        %313 = vmatpush1.xpose.msra.mxu0 %v282
        %314 = vmatprep.subr.mxu0 %v281
        %315 = vmatpush1.xpose.msra.mxu0 %v280
        %316 = vmatprep.subr.mxu0 %v279
        %317 = vmatpush1.xpose.msra.mxu0 %v278
        %318 = vmatprep.subr.mxu0 %v277
        %319 = vmatpush1.xpose.msra.mxu0 %v276
        %320 = vmatprep.subr.mxu0 0.0
        %321 = vmatpush2.xpose.msra.mxu0 0.0
        %322 = vmatprep.subr.mxu0 0.0
        %323 = vmatpush2.xpose.msra.mxu0 0.0
        %324 = vmatprep.subr.mxu0 0.0
        %325 = vmatpush2.xpose.msra.mxu0 0.0
        %326 = vmatprep.subr.mxu0 0.0
        %327 = vmatpush2.xpose.msra.mxu0 0.0
        %328 = vmatprep.subr.mxu0 0.0
        %329 = vmatpush2.xpose.msra.mxu0 0.0
        %330 = vmatprep.subr.mxu0 0.0
        %331 = vmatpush2.xpose.msra.mxu0 0.0
        %332 = vmatprep.subr.mxu0 0.0
        %333 = vmatpush2.xpose.msra.mxu0 0.0
        %334 = vmatprep.subr.mxu0 0.0
        %335 = vmatpush2.xpose.msra.mxu0 0.0
        %336 = vmatprep.subr.mxu0 0.0
        %337 = vmatpush2.xpose.msra.mxu0 0.0
        %338 = vmatprep.subr.mxu0 0.0
        %339 = vmatpush2.xpose.msra.mxu0 0.0
        %340 = vmatprep.subr.mxu0 0.0
        %341 = vmatpush2.xpose.msra.mxu0 0.0
        %342 = vmatprep.subr.mxu0 0.0
        %343 = vmatpush2.xpose.msra.mxu0 0.0
        %344 = vmatprep.subr.mxu0 0.0
        %345 = vmatpush2.xpose.msra.mxu0 0.0
        %346 = vmatprep.subr.mxu0 0.0
        %347 = vmatpush2.xpose.msra.mxu0 0.0
        %348 = vmatprep.subr.mxu0 0.0
        %349 = vmatpush2.xpose.msra.mxu0 0.0
        %350 = vmatprep.subr.mxu0 0.0
        %351 = vmatpush2.xpose.msra.mxu0 0.0
        %352 = vmatprep.mubr.f32.mxu0 %v277
        %353 = vmatmul.mubr.f32.gmra.mxu0 %v276
        %v354 = vpop.f32.mrf.mxu0
        %v355 = vadd.f32 0.0, %v354
        %v356 = vpop.f32.mrf.mxu0
        %357 = vmatprep.mubr.f32.mxu0 %v279
        %358 = vmatmul.mubr.f32.gmra.mxu0 %v278
        %v359 = vpop.f32.mrf.mxu0
        %v360 = vadd.f32 0.0, %v359
        %v361 = vpop.f32.mrf.mxu0
        %362 = vmatprep.mubr.f32.mxu0 %v281
        %363 = vmatmul.mubr.f32.gmra.mxu0 %v280
        %v364 = vpop.f32.mrf.mxu0
        %v365 = vadd.f32 0.0, %v364
        %v366 = vpop.f32.mrf.mxu0
        %367 = vmatprep.mubr.f32.mxu0 %v283
        %368 = vmatmul.mubr.f32.gmra.mxu0 %v282
        %v369 = vpop.f32.mrf.mxu0
        %v370 = vadd.f32 0.0, %v369
        %v371 = vpop.f32.mrf.mxu0
        %372 = vdwg.mxu0
        %v373 = vadd.f32 %v284, %v355
        %v374 = vadd.f32 %v285, %v360
        %v375 = vadd.f32 %v286, %v365
        %v376 = vadd.f32 %v287, %v370
        %vm377 = vcmask 261120
        %378 = vst.msk [vmem:[#allocation2] sm:$0xff] %vm377, %v373
        %379 = vst.msk [vmem:[#allocation2 + $0x8] sm:$0xff] %vm377, %v374
        %380 = vst.msk [vmem:[#allocation2 + $0x10] sm:$0xff] %vm377, %v375
        %381 = vst.msk [vmem:[#allocation2 + $0x18] sm:$0xff] %vm377, %v376
        %v382 = vld [vmem:[#allocation3] sm:$0xff]
        %v383 = vld [vmem:[#allocation3 + $0x8] sm:$0xff]
        %v384 = vld [vmem:[#allocation3 + $0x10] sm:$0xff]
        %v385 = vld [vmem:[#allocation3 + $0x18] sm:$0xff]
        %386 = vmatprep.subr.mxu0 0.0
        %387 = vmatpush1.msra.mxu0 1.0
        %388 = vmatprep.subr.mxu0 0.0
        %389 = vmatpush1.msra.mxu0 1.0
        %390 = vmatprep.subr.mxu0 0.0
        %391 = vmatpush1.msra.mxu0 1.0
        %392 = vmatprep.subr.mxu0 0.0
        %393 = vmatpush1.msra.mxu0 1.0
        %394 = vmatprep.subr.mxu0 0.0
        %395 = vmatpush1.msra.mxu0 1.0
        %396 = vmatprep.subr.mxu0 0.0
        %397 = vmatpush1.msra.mxu0 1.0
        %398 = vmatprep.subr.mxu0 0.0
        %399 = vmatpush1.msra.mxu0 1.0
        %400 = vmatprep.subr.mxu0 0.0
        %401 = vmatpush1.msra.mxu0 1.0
        %402 = vmatprep.subr.mxu0 0.0
        %403 = vmatpush1.msra.mxu0 1.0
        %404 = vmatprep.subr.mxu0 0.0
        %405 = vmatpush1.msra.mxu0 1.0
        %406 = vmatprep.subr.mxu0 0.0
        %407 = vmatpush1.msra.mxu0 1.0
        %408 = vmatprep.subr.mxu0 0.0
        %409 = vmatpush1.msra.mxu0 1.0
        %410 = vmatprep.subr.mxu0 0.0
        %411 = vmatpush1.msra.mxu0 1.0
        %412 = vmatprep.subr.mxu0 0.0
        %413 = vmatpush1.msra.mxu0 1.0
        %414 = vmatprep.subr.mxu0 0.0
        %415 = vmatpush1.msra.mxu0 1.0
        %416 = vmatprep.subr.mxu0 0.0
        %417 = vmatpush1.msra.mxu0 1.0
        %418 = vmatprep.subr.mxu0 0.0
        %419 = vmatpush2.msra.mxu0 1.0
        %420 = vmatprep.subr.mxu0 0.0
        %421 = vmatpush2.msra.mxu0 1.0
        %422 = vmatprep.subr.mxu0 0.0
        %423 = vmatpush2.msra.mxu0 1.0
        %424 = vmatprep.subr.mxu0 0.0
        %425 = vmatpush2.msra.mxu0 1.0
        %426 = vmatprep.subr.mxu0 0.0
        %427 = vmatpush2.msra.mxu0 1.0
        %428 = vmatprep.subr.mxu0 0.0
        %429 = vmatpush2.msra.mxu0 1.0
        %430 = vmatprep.subr.mxu0 0.0
        %431 = vmatpush2.msra.mxu0 1.0
        %432 = vmatprep.subr.mxu0 0.0
        %433 = vmatpush2.msra.mxu0 1.0
        %434 = vmatprep.subr.mxu0 0.0
        %435 = vmatpush2.msra.mxu0 1.0
        %436 = vmatprep.subr.mxu0 0.0
        %437 = vmatpush2.msra.mxu0 1.0
        %438 = vmatprep.subr.mxu0 0.0
        %439 = vmatpush2.msra.mxu0 1.0
        %440 = vmatprep.subr.mxu0 0.0
        %441 = vmatpush2.msra.mxu0 1.0
        %442 = vmatprep.subr.mxu0 0.0
        %443 = vmatpush2.msra.mxu0 1.0
        %444 = vmatprep.subr.mxu0 0.0
        %445 = vmatpush2.msra.mxu0 1.0
        %446 = vmatprep.subr.mxu0 0.0
        %447 = vmatpush2.msra.mxu0 1.0
        %448 = vmatprep.subr.mxu0 0.0
        %449 = vmatpush2.msra.mxu0 1.0
        %450 = vmatprep.mubr.f32.mxu0 %v277
        %451 = vmatmul.mubr.f32.gmra.mxu0 %v276
        %v452 = vpop.f32.mrf.mxu0
        %v453 = vadd.f32 0.0, %v452
        %v454 = vpop.f32.mrf.mxu0
        %455 = vmatprep.mubr.f32.mxu0 %v279
        %456 = vmatmul.mubr.f32.gmra.mxu0 %v278
        %v457 = vpop.f32.mrf.mxu0
        %v458 = vadd.f32 0.0, %v457
        %v459 = vpop.f32.mrf.mxu0
        %460 = vmatprep.mubr.f32.mxu0 %v281
        %461 = vmatmul.mubr.f32.gmra.mxu0 %v280
        %v462 = vpop.f32.mrf.mxu0
        %v463 = vadd.f32 0.0, %v462
        %v464 = vpop.f32.mrf.mxu0
        %465 = vmatprep.mubr.f32.mxu0 %v283
        %466 = vmatmul.mubr.f32.gmra.mxu0 %v282
        %v467 = vpop.f32.mrf.mxu0
        %v468 = vadd.f32 0.0, %v467
        %v469 = vpop.f32.mrf.mxu0
        %470 = vdwg.mxu0
        %v471 = vadd.f32 %v382, %v453
        %v472 = vadd.f32 %v383, %v458
        %v473 = vadd.f32 %v384, %v463
        %v474 = vadd.f32 %v385, %v468
        %vm475 = vcmask 7168
        %476 = vst.msk [vmem:[#allocation3] sm:$0xff] %vm475, %v471
        %477 = vst.msk [vmem:[#allocation3 + $0x8] sm:$0xff] %vm475, %v472
        %478 = vst.msk [vmem:[#allocation3 + $0x10] sm:$0xff] %vm475, %v473
        %479 = vst.msk [vmem:[#allocation3 + $0x18] sm:$0xff] %vm475, %v474
        // Predicated region
        $region49: #{tpu_custom_call.1} parent=39 // pred_check
          %p480 = pneg %p262
        $region50: #{tpu_custom_call.1} parent=39 // pred_check_branch
          %482 = sbr.rel (%p480) target = $region52
        $region51: #{tpu_custom_call.1} parent=39 // pred_region
          %v483 = vld [vmem:[#allocation3] sm:$0xff]
          %v484 = vld [vmem:[#allocation3 + $0x8] sm:$0xff]
          %v485 = vld [vmem:[#allocation3 + $0x10] sm:$0xff]
          %v486 = vld [vmem:[#allocation3 + $0x18] sm:$0xff]
          %v488 = vsel %vm475, %v483, 0
          %v491 = vsel %vm475, %v484, 0
          %v494 = vsel %vm475, %v485, 0
          %v497 = vsel %vm475, %v486, 0
          %499 = vmatprep.subr.mxu0 0.0
          %500 = vmatpush1.xpose.msra.mxu0 0.0
          %501 = vmatprep.subr.mxu0 0.0
          %502 = vmatpush1.xpose.msra.mxu0 0.0
          %503 = vmatprep.subr.mxu0 0.0
          %504 = vmatpush1.xpose.msra.mxu0 0.0
          %505 = vmatprep.subr.mxu0 0.0
          %506 = vmatpush1.xpose.msra.mxu0 0.0
          %507 = vmatprep.subr.mxu0 0.0
          %508 = vmatpush1.xpose.msra.mxu0 0.0
          %509 = vmatprep.subr.mxu0 0.0
          %510 = vmatpush1.xpose.msra.mxu0 0.0
          %511 = vmatprep.subr.mxu0 0.0
          %512 = vmatpush1.xpose.msra.mxu0 0.0
          %513 = vmatprep.subr.mxu0 0.0
          %514 = vmatpush1.xpose.msra.mxu0 0.0
          %515 = vmatprep.subr.mxu0 0.0
          %516 = vmatpush1.xpose.msra.mxu0 0.0
          %517 = vmatprep.subr.mxu0 0.0
          %518 = vmatpush1.xpose.msra.mxu0 0.0
          %519 = vmatprep.subr.mxu0 0.0
          %520 = vmatpush1.xpose.msra.mxu0 0.0
          %521 = vmatprep.subr.mxu0 0.0
          %522 = vmatpush1.xpose.msra.mxu0 0.0
          %523 = vmatprep.subr.mxu0 0.0
          %524 = vmatpush1.xpose.msra.mxu0 %v497
          %525 = vmatprep.subr.mxu0 0.0
          %526 = vmatpush1.xpose.msra.mxu0 %v494
          %527 = vmatprep.subr.mxu0 0.0
          %528 = vmatpush1.xpose.msra.mxu0 %v491
          %529 = vmatprep.subr.mxu0 0.0
          %530 = vmatpush1.xpose.msra.mxu0 %v488
          %531 = vmatprep.subr.mxu0 0.0
          %532 = vmatpush2.xpose.msra.mxu0 0.0
          %533 = vmatprep.subr.mxu0 0.0
          %534 = vmatpush2.xpose.msra.mxu0 0.0
          %535 = vmatprep.subr.mxu0 0.0
          %536 = vmatpush2.xpose.msra.mxu0 0.0
          %537 = vmatprep.subr.mxu0 0.0
          %538 = vmatpush2.xpose.msra.mxu0 0.0
          %539 = vmatprep.subr.mxu0 0.0
          %540 = vmatpush2.xpose.msra.mxu0 0.0
          %541 = vmatprep.subr.mxu0 0.0
          %542 = vmatpush2.xpose.msra.mxu0 0.0
          %543 = vmatprep.subr.mxu0 0.0
          %544 = vmatpush2.xpose.msra.mxu0 0.0
          %545 = vmatprep.subr.mxu0 0.0
          %546 = vmatpush2.xpose.msra.mxu0 0.0
          %547 = vmatprep.subr.mxu0 0.0
          %548 = vmatpush2.xpose.msra.mxu0 0.0
          %549 = vmatprep.subr.mxu0 0.0
          %550 = vmatpush2.xpose.msra.mxu0 0.0
          %551 = vmatprep.subr.mxu0 0.0
          %552 = vmatpush2.xpose.msra.mxu0 0.0
          %553 = vmatprep.subr.mxu0 0.0
          %554 = vmatpush2.xpose.msra.mxu0 0.0
          %555 = vmatprep.subr.mxu0 0.0
          %556 = vmatpush2.xpose.msra.mxu0 0.0
          %557 = vmatprep.subr.mxu0 0.0
          %558 = vmatpush2.xpose.msra.mxu0 0.0
          %559 = vmatprep.subr.mxu0 0.0
          %560 = vmatpush2.xpose.msra.mxu0 0.0
          %561 = vmatprep.subr.mxu0 0.0
          %562 = vmatpush2.xpose.msra.mxu0 0.0
          %563 = vmatprep.mubr.f32.mxu0 0.0
          %564 = vmatmul.mubr.f32.gmra.mxu0 %v488
          %v565 = vpop.f32.mrf.mxu0
          %v566 = vadd.f32 0.0, %v565
          %v567 = vpop.f32.mrf.mxu0
          %568 = vmatprep.mubr.f32.mxu0 0.0
          %569 = vmatmul.mubr.f32.gmra.mxu0 %v491
          %v570 = vpop.f32.mrf.mxu0
          %v571 = vadd.f32 0.0, %v570
          %v572 = vpop.f32.mrf.mxu0
          %573 = vmatprep.mubr.f32.mxu0 0.0
          %574 = vmatmul.mubr.f32.gmra.mxu0 %v494
          %v575 = vpop.f32.mrf.mxu0
          %v576 = vadd.f32 0.0, %v575
          %v577 = vpop.f32.mrf.mxu0
          %578 = vmatprep.mubr.f32.mxu0 0.0
          %579 = vmatmul.mubr.f32.gmra.mxu0 %v497
          %v580 = vpop.f32.mrf.mxu0
          %v581 = vadd.f32 0.0, %v580
          %v582 = vpop.f32.mrf.mxu0
          %583 = vdwg.mxu0
          %v584 = vld [vmem:[#allocation2] sm:$0xff]
          %v585 = vld [vmem:[#allocation2 + $0x8] sm:$0xff]
          %v586 = vld [vmem:[#allocation2 + $0x10] sm:$0xff]
          %v587 = vld [vmem:[#allocation2 + $0x18] sm:$0xff]
          %v588 = vmul.f32 %v584, 0.00390625
          %v589 = vmul.f32 %v585, 0.00390625
          %v590 = vmul.f32 %v586, 0.00390625
          %v591 = vmul.f32 %v587, 0.00390625
          %v592 = vmul.f32 %v566, 1.5258789e-05
          %v593 = vmul.f32 %v571, 1.5258789e-05
          %v594 = vmul.f32 %v576, 1.5258789e-05
          %v595 = vmul.f32 %v581, 1.5258789e-05
          %v596 = vsub.f32 %v588, %v592
          %v597 = vsub.f32 %v589, %v593
          %v598 = vsub.f32 %v590, %v594
          %v599 = vsub.f32 %v591, %v595
          %v600 = vlaneseq
          %v601 = vshrl.u32 %v600, 7
          %v602 = vadd.s32 %v601, 8
          %v603 = vadd.s32 %v601, 16
          %v604 = vadd.s32 %v601, 24
          %v605 = vlaneseq
          %v606 = vand.u32 %v605, 127
          %vm607 = vcmp.eq.s32.totalorder %v601, %v606
          %vm608 = vcmp.eq.s32.totalorder %v602, %v606
          %vm609 = vcmp.eq.s32.totalorder %v603, %v606
          %vm610 = vcmp.eq.s32.totalorder %v604, %v606
          %v611 = vsel %vm607, 1.0, 0.0
          %v612 = vsel %vm608, 1.0, 0.0
          %v613 = vsel %vm609, 1.0, 0.0
          %v614 = vsel %vm610, 1.0, 0.0
          %v615 = vmul.f32 %v611, 3.0
          %v616 = vmul.f32 %v612, 3.0
          %v617 = vmul.f32 %v613, 3.0
          %v618 = vmul.f32 %v614, 3.0
          %v619 = vmul.f32 %v596, %v611
          %v620 = vmul.f32 %v597, %v612
          %v621 = vmul.f32 %v598, %v613
          %v622 = vmul.f32 %v599, %v614
          %v623 = vsel %vm377, %v619, 0.0
          %v624 = vsel %vm377, %v620, 0.0
          %v625 = vadd.f32 %v623, %v624
          %v626 = vsel %vm377, %v621, 0.0
          %v627 = vadd.f32 %v625, %v626
          %v628 = vsel %vm377, %v622, 0.0
          %v629 = vadd.f32 %v627, %v628
          %630 = vadd.xlane.f32.xlu0 %v629
          %v631 = vpop.xlane.xlu0 %630
          %v632 = vrot.slane %v631, 4
          %v633 = vadd.f32 %v631, %v632
          %v634 = vrot.slane %v633, 2
          %v635 = vadd.f32 %v633, %v634
          %v636 = vrot.slane %v635, 1
          %v637 = vadd.f32 %v635, %v636
          %s638 = vtos %v637
          %v639 = vstv %s638
          %v640 = vrcp.pop %v639
          %v641 = vmul.f32 %v596, %v640
          %v642 = vmul.f32 %v597, %v640
          %v643 = vmul.f32 %v598, %v640
          %v644 = vmul.f32 %v599, %v640
          %v645 = vsub.f32 %v615, %v641
          %v646 = vsub.f32 %v616, %v642
          %v647 = vsub.f32 %v617, %v643
          %v648 = vsub.f32 %v618, %v644
          %v649 = vmul.f32 %v645, 0.5
          %v650 = vmul.f32 %v646, 0.5
          %v651 = vmul.f32 %v647, 0.5
          %v652 = vmul.f32 %v648, 0.5
          %v654 = vsel %vm377, %v641, 0
          %v657 = vsel %vm377, %v642, 0
          %v660 = vsel %vm377, %v643, 0
          %v663 = vsel %vm377, %v644, 0
          %665 = vmatprep.subr.mxu0 0.0
          %666 = vmatpush1.msra.mxu0 0.0
          %667 = vmatprep.subr.mxu0 0.0
          %668 = vmatpush1.msra.mxu0 0.0
          %669 = vmatprep.subr.mxu0 0.0
          %670 = vmatpush1.msra.mxu0 0.0
          %671 = vmatprep.subr.mxu0 0.0
          %672 = vmatpush1.msra.mxu0 0.0
          %673 = vmatprep.subr.mxu0 0.0
          %674 = vmatpush1.msra.mxu0 0.0
          %675 = vmatprep.subr.mxu0 0.0
          %676 = vmatpush1.msra.mxu0 0.0
          %677 = vmatprep.subr.mxu0 0.0
          %678 = vmatpush1.msra.mxu0 0.0
          %679 = vmatprep.subr.mxu0 0.0
          %680 = vmatpush1.msra.mxu0 0.0
          %681 = vmatprep.subr.mxu0 0.0
          %682 = vmatpush1.msra.mxu0 0.0
          %683 = vmatprep.subr.mxu0 0.0
          %684 = vmatpush1.msra.mxu0 0.0
          %685 = vmatprep.subr.mxu0 0.0
          %686 = vmatpush1.msra.mxu0 0.0
          %687 = vmatprep.subr.mxu0 0.0
          %688 = vmatpush1.msra.mxu0 0.0
          %689 = vmatprep.subr.mxu0 0.0
          %690 = vmatpush1.msra.mxu0 %v652
          %691 = vmatprep.subr.mxu0 0.0
          %692 = vmatpush1.msra.mxu0 %v651
          %693 = vmatprep.subr.mxu0 0.0
          %694 = vmatpush1.msra.mxu0 %v650
          %695 = vmatprep.subr.mxu0 0.0
          %696 = vmatpush1.msra.mxu0 %v649
          %697 = vmatprep.subr.mxu0 0.0
          %698 = vmatpush2.msra.mxu0 0.0
          %699 = vmatprep.subr.mxu0 0.0
          %700 = vmatpush2.msra.mxu0 0.0
          %701 = vmatprep.subr.mxu0 0.0
          %702 = vmatpush2.msra.mxu0 0.0
          %703 = vmatprep.subr.mxu0 0.0
          %704 = vmatpush2.msra.mxu0 0.0
          %705 = vmatprep.subr.mxu0 0.0
          %706 = vmatpush2.msra.mxu0 0.0
          %707 = vmatprep.subr.mxu0 0.0
          %708 = vmatpush2.msra.mxu0 0.0
          %709 = vmatprep.subr.mxu0 0.0
          %710 = vmatpush2.msra.mxu0 0.0
          %711 = vmatprep.subr.mxu0 0.0
          %712 = vmatpush2.msra.mxu0 0.0
          %713 = vmatprep.subr.mxu0 0.0
          %714 = vmatpush2.msra.mxu0 0.0
          %715 = vmatprep.subr.mxu0 0.0
          %716 = vmatpush2.msra.mxu0 0.0
          %717 = vmatprep.subr.mxu0 0.0
          %718 = vmatpush2.msra.mxu0 0.0
          %719 = vmatprep.subr.mxu0 0.0
          %720 = vmatpush2.msra.mxu0 0.0
          %721 = vmatprep.subr.mxu0 0.0
          %722 = vmatpush2.msra.mxu0 0.0
          %723 = vmatprep.subr.mxu0 0.0
          %724 = vmatpush2.msra.mxu0 0.0
          %725 = vmatprep.subr.mxu0 0.0
          %726 = vmatpush2.msra.mxu0 0.0
          %727 = vmatprep.subr.mxu0 0.0
          %728 = vmatpush2.msra.mxu0 0.0
          %729 = vmatprep.mubr.f32.mxu0 0.0
          %730 = vmatmul.mubr.f32.gmra.mxu0 %v654
          %v731 = vpop.f32.mrf.mxu0
          %v732 = vadd.f32 0.0, %v731
          %v733 = vpop.f32.mrf.mxu0
          %734 = vmatprep.mubr.f32.mxu0 0.0
          %735 = vmatmul.mubr.f32.gmra.mxu0 %v657
          %v736 = vpop.f32.mrf.mxu0
          %v737 = vadd.f32 0.0, %v736
          %v738 = vpop.f32.mrf.mxu0
          %739 = vmatprep.mubr.f32.mxu0 0.0
          %740 = vmatmul.mubr.f32.gmra.mxu0 %v660
          %v741 = vpop.f32.mrf.mxu0
          %v742 = vadd.f32 0.0, %v741
          %v743 = vpop.f32.mrf.mxu0
          %744 = vmatprep.mubr.f32.mxu0 0.0
          %745 = vmatmul.mubr.f32.gmra.mxu0 %v663
          %v746 = vpop.f32.mrf.mxu0
          %v747 = vadd.f32 0.0, %v746
          %v748 = vpop.f32.mrf.mxu0
          %749 = vdwg.mxu0
          %v751 = vsel %vm377, %v649, 0
          %v754 = vsel %vm377, %v650, 0
          %v757 = vsel %vm377, %v651, 0
          %v760 = vsel %vm377, %v652, 0
          %762 = vmatprep.subr.mxu0 0.0
          %763 = vmatpush1.msra.mxu0 0.0
          %764 = vmatprep.subr.mxu0 0.0
          %765 = vmatpush1.msra.mxu0 0.0
          %766 = vmatprep.subr.mxu0 0.0
          %767 = vmatpush1.msra.mxu0 0.0
          %768 = vmatprep.subr.mxu0 0.0
          %769 = vmatpush1.msra.mxu0 0.0
          %770 = vmatprep.subr.mxu0 0.0
          %771 = vmatpush1.msra.mxu0 0.0
          %772 = vmatprep.subr.mxu0 0.0
          %773 = vmatpush1.msra.mxu0 0.0
          %774 = vmatprep.subr.mxu0 0.0
          %775 = vmatpush1.msra.mxu0 0.0
          %776 = vmatprep.subr.mxu0 0.0
          %777 = vmatpush1.msra.mxu0 0.0
          %778 = vmatprep.subr.mxu0 0.0
          %779 = vmatpush1.msra.mxu0 0.0
          %780 = vmatprep.subr.mxu0 0.0
          %781 = vmatpush1.msra.mxu0 0.0
          %782 = vmatprep.subr.mxu0 0.0
          %783 = vmatpush1.msra.mxu0 0.0
          %784 = vmatprep.subr.mxu0 0.0
          %785 = vmatpush1.msra.mxu0 0.0
          %786 = vmatprep.subr.mxu0 0.0
          %787 = vmatpush1.msra.mxu0 %v747
          %788 = vmatprep.subr.mxu0 0.0
          %789 = vmatpush1.msra.mxu0 %v742
          %790 = vmatprep.subr.mxu0 0.0
          %791 = vmatpush1.msra.mxu0 %v737
          %792 = vmatprep.subr.mxu0 0.0
          %793 = vmatpush1.msra.mxu0 %v732
          %794 = vmatprep.subr.mxu0 0.0
          %795 = vmatpush2.msra.mxu0 0.0
          %796 = vmatprep.subr.mxu0 0.0
          %797 = vmatpush2.msra.mxu0 0.0
          %798 = vmatprep.subr.mxu0 0.0
          %799 = vmatpush2.msra.mxu0 0.0
          %800 = vmatprep.subr.mxu0 0.0
          %801 = vmatpush2.msra.mxu0 0.0
          %802 = vmatprep.subr.mxu0 0.0
          %803 = vmatpush2.msra.mxu0 0.0
          %804 = vmatprep.subr.mxu0 0.0
          %805 = vmatpush2.msra.mxu0 0.0
          %806 = vmatprep.subr.mxu0 0.0
          %807 = vmatpush2.msra.mxu0 0.0
          %808 = vmatprep.subr.mxu0 0.0
          %809 = vmatpush2.msra.mxu0 0.0
          %810 = vmatprep.subr.mxu0 0.0
          %811 = vmatpush2.msra.mxu0 0.0
          %812 = vmatprep.subr.mxu0 0.0
          %813 = vmatpush2.msra.mxu0 0.0
          %814 = vmatprep.subr.mxu0 0.0
          %815 = vmatpush2.msra.mxu0 0.0
          %816 = vmatprep.subr.mxu0 0.0
          %817 = vmatpush2.msra.mxu0 0.0
          %818 = vmatprep.subr.mxu0 0.0
          %819 = vmatpush2.msra.mxu0 0.0
          %820 = vmatprep.subr.mxu0 0.0
          %821 = vmatpush2.msra.mxu0 0.0
          %822 = vmatprep.subr.mxu0 0.0
          %823 = vmatpush2.msra.mxu0 0.0
          %824 = vmatprep.subr.mxu0 0.0
          %825 = vmatpush2.msra.mxu0 0.0
          %826 = vmatprep.mubr.f32.mxu0 0.0
          %827 = vmatmul.mubr.f32.gmra.mxu0 %v751
          %v828 = vpop.f32.mrf.mxu0
          %v829 = vadd.f32 0.0, %v828
          %v830 = vpop.f32.mrf.mxu0
          %831 = vmatprep.mubr.f32.mxu0 0.0
          %832 = vmatmul.mubr.f32.gmra.mxu0 %v754
          %v833 = vpop.f32.mrf.mxu0
          %v834 = vadd.f32 0.0, %v833
          %v835 = vpop.f32.mrf.mxu0
          %836 = vmatprep.mubr.f32.mxu0 0.0
          %837 = vmatmul.mubr.f32.gmra.mxu0 %v757
          %v838 = vpop.f32.mrf.mxu0
          %v839 = vadd.f32 0.0, %v838
          %v840 = vpop.f32.mrf.mxu0
          %841 = vmatprep.mubr.f32.mxu0 0.0
          %842 = vmatmul.mubr.f32.gmra.mxu0 %v760
          %v843 = vpop.f32.mrf.mxu0
          %v844 = vadd.f32 0.0, %v843
          %v845 = vpop.f32.mrf.mxu0
          %846 = vdwg.mxu0
          %v847 = vsub.f32 %v615, %v829
          %v848 = vsub.f32 %v616, %v834
          %v849 = vsub.f32 %v617, %v839
          %v850 = vsub.f32 %v618, %v844
          %v851 = vmul.f32 %v847, 0.5
          %v852 = vmul.f32 %v848, 0.5
          %v853 = vmul.f32 %v849, 0.5
          %v854 = vmul.f32 %v850, 0.5
          %v856 = vsel %vm377, %v732, 0
          %v859 = vsel %vm377, %v737, 0
          %v862 = vsel %vm377, %v742, 0
          %v865 = vsel %vm377, %v747, 0
          %867 = vmatprep.subr.mxu0 0.0
          %868 = vmatpush1.msra.mxu0 0.0
          %869 = vmatprep.subr.mxu0 0.0
          %870 = vmatpush1.msra.mxu0 0.0
          %871 = vmatprep.subr.mxu0 0.0
          %872 = vmatpush1.msra.mxu0 0.0
          %873 = vmatprep.subr.mxu0 0.0
          %874 = vmatpush1.msra.mxu0 0.0
          %875 = vmatprep.subr.mxu0 0.0
          %876 = vmatpush1.msra.mxu0 0.0
          %877 = vmatprep.subr.mxu0 0.0
          %878 = vmatpush1.msra.mxu0 0.0
          %879 = vmatprep.subr.mxu0 0.0
          %880 = vmatpush1.msra.mxu0 0.0
          %881 = vmatprep.subr.mxu0 0.0
          %882 = vmatpush1.msra.mxu0 0.0
          %883 = vmatprep.subr.mxu0 0.0
          %884 = vmatpush1.msra.mxu0 0.0
          %885 = vmatprep.subr.mxu0 0.0
          %886 = vmatpush1.msra.mxu0 0.0
          %887 = vmatprep.subr.mxu0 0.0
          %888 = vmatpush1.msra.mxu0 0.0
          %889 = vmatprep.subr.mxu0 0.0
          %890 = vmatpush1.msra.mxu0 0.0
          %891 = vmatprep.subr.mxu0 0.0
          %892 = vmatpush1.msra.mxu0 %v854
          %893 = vmatprep.subr.mxu0 0.0
          %894 = vmatpush1.msra.mxu0 %v853
          %895 = vmatprep.subr.mxu0 0.0
          %896 = vmatpush1.msra.mxu0 %v852
          %897 = vmatprep.subr.mxu0 0.0
          %898 = vmatpush1.msra.mxu0 %v851
          %899 = vmatprep.subr.mxu0 0.0
          %900 = vmatpush2.msra.mxu0 0.0
          %901 = vmatprep.subr.mxu0 0.0
          %902 = vmatpush2.msra.mxu0 0.0
          %903 = vmatprep.subr.mxu0 0.0
          %904 = vmatpush2.msra.mxu0 0.0
          %905 = vmatprep.subr.mxu0 0.0
          %906 = vmatpush2.msra.mxu0 0.0
          %907 = vmatprep.subr.mxu0 0.0
          %908 = vmatpush2.msra.mxu0 0.0
          %909 = vmatprep.subr.mxu0 0.0
          %910 = vmatpush2.msra.mxu0 0.0
          %911 = vmatprep.subr.mxu0 0.0
          %912 = vmatpush2.msra.mxu0 0.0
          %913 = vmatprep.subr.mxu0 0.0
          %914 = vmatpush2.msra.mxu0 0.0
          %915 = vmatprep.subr.mxu0 0.0
          %916 = vmatpush2.msra.mxu0 0.0
          %917 = vmatprep.subr.mxu0 0.0
          %918 = vmatpush2.msra.mxu0 0.0
          %919 = vmatprep.subr.mxu0 0.0
          %920 = vmatpush2.msra.mxu0 0.0
          %921 = vmatprep.subr.mxu0 0.0
          %922 = vmatpush2.msra.mxu0 0.0
          %923 = vmatprep.subr.mxu0 0.0
          %924 = vmatpush2.msra.mxu0 0.0
          %925 = vmatprep.subr.mxu0 0.0
          %926 = vmatpush2.msra.mxu0 0.0
          %927 = vmatprep.subr.mxu0 0.0
          %928 = vmatpush2.msra.mxu0 0.0
          %929 = vmatprep.subr.mxu0 0.0
          %930 = vmatpush2.msra.mxu0 0.0
          %931 = vmatprep.mubr.f32.mxu0 0.0
          %932 = vmatmul.mubr.f32.gmra.mxu0 %v856
          %v933 = vpop.f32.mrf.mxu0
          %v934 = vadd.f32 0.0, %v933
          %v935 = vpop.f32.mrf.mxu0
          %936 = vmatprep.mubr.f32.mxu0 0.0
          %937 = vmatmul.mubr.f32.gmra.mxu0 %v859
          %v938 = vpop.f32.mrf.mxu0
          %v939 = vadd.f32 0.0, %v938
          %v940 = vpop.f32.mrf.mxu0
          %941 = vmatprep.mubr.f32.mxu0 0.0
          %942 = vmatmul.mubr.f32.gmra.mxu0 %v862
          %v943 = vpop.f32.mrf.mxu0
          %v944 = vadd.f32 0.0, %v943
          %v945 = vpop.f32.mrf.mxu0
          %946 = vmatprep.mubr.f32.mxu0 0.0
          %947 = vmatmul.mubr.f32.gmra.mxu0 %v865
          %v948 = vpop.f32.mrf.mxu0
          %v949 = vadd.f32 0.0, %v948
          %v950 = vpop.f32.mrf.mxu0
          %951 = vdwg.mxu0
          %v953 = vsel %vm377, %v851, 0
          %v956 = vsel %vm377, %v852, 0
          %v959 = vsel %vm377, %v853, 0
          %v962 = vsel %vm377, %v854, 0
          %964 = vmatprep.subr.mxu0 0.0
          %965 = vmatpush1.msra.mxu0 0.0
          %966 = vmatprep.subr.mxu0 0.0
          %967 = vmatpush1.msra.mxu0 0.0
          %968 = vmatprep.subr.mxu0 0.0
          %969 = vmatpush1.msra.mxu0 0.0
          %970 = vmatprep.subr.mxu0 0.0
          %971 = vmatpush1.msra.mxu0 0.0
          %972 = vmatprep.subr.mxu0 0.0
          %973 = vmatpush1.msra.mxu0 0.0
          %974 = vmatprep.subr.mxu0 0.0
          %975 = vmatpush1.msra.mxu0 0.0
          %976 = vmatprep.subr.mxu0 0.0
          %977 = vmatpush1.msra.mxu0 0.0
          %978 = vmatprep.subr.mxu0 0.0
          %979 = vmatpush1.msra.mxu0 0.0
          %980 = vmatprep.subr.mxu0 0.0
          %981 = vmatpush1.msra.mxu0 0.0
          %982 = vmatprep.subr.mxu0 0.0
          %983 = vmatpush1.msra.mxu0 0.0
          %984 = vmatprep.subr.mxu0 0.0
          %985 = vmatpush1.msra.mxu0 0.0
          %986 = vmatprep.subr.mxu0 0.0
          %987 = vmatpush1.msra.mxu0 0.0
          %988 = vmatprep.subr.mxu0 0.0
          %989 = vmatpush1.msra.mxu0 %v652
          %990 = vmatprep.subr.mxu0 0.0
          %991 = vmatpush1.msra.mxu0 %v651
          %992 = vmatprep.subr.mxu0 0.0
          %993 = vmatpush1.msra.mxu0 %v650
          %994 = vmatprep.subr.mxu0 0.0
          %995 = vmatpush1.msra.mxu0 %v649
          %996 = vmatprep.subr.mxu0 0.0
          %997 = vmatpush2.msra.mxu0 0.0
          %998 = vmatprep.subr.mxu0 0.0
          %999 = vmatpush2.msra.mxu0 0.0
          %1000 = vmatprep.subr.mxu0 0.0
          %1001 = vmatpush2.msra.mxu0 0.0
          %1002 = vmatprep.subr.mxu0 0.0
          %1003 = vmatpush2.msra.mxu0 0.0
          %1004 = vmatprep.subr.mxu0 0.0
          %1005 = vmatpush2.msra.mxu0 0.0
          %1006 = vmatprep.subr.mxu0 0.0
          %1007 = vmatpush2.msra.mxu0 0.0
          %1008 = vmatprep.subr.mxu0 0.0
          %1009 = vmatpush2.msra.mxu0 0.0
          %1010 = vmatprep.subr.mxu0 0.0
          %1011 = vmatpush2.msra.mxu0 0.0
          %1012 = vmatprep.subr.mxu0 0.0
          %1013 = vmatpush2.msra.mxu0 0.0
          %1014 = vmatprep.subr.mxu0 0.0
          %1015 = vmatpush2.msra.mxu0 0.0
          %1016 = vmatprep.subr.mxu0 0.0
          %1017 = vmatpush2.msra.mxu0 0.0
          %1018 = vmatprep.subr.mxu0 0.0
          %1019 = vmatpush2.msra.mxu0 0.0
          %1020 = vmatprep.subr.mxu0 0.0
          %1021 = vmatpush2.msra.mxu0 0.0
          %1022 = vmatprep.subr.mxu0 0.0
          %1023 = vmatpush2.msra.mxu0 0.0
          %1024 = vmatprep.subr.mxu0 0.0
          %1025 = vmatpush2.msra.mxu0 0.0
          %1026 = vmatprep.subr.mxu0 0.0
          %1027 = vmatpush2.msra.mxu0 0.0
          %1028 = vmatprep.mubr.f32.mxu0 0.0
          %1029 = vmatmul.mubr.f32.gmra.mxu0 %v953
          %v1030 = vpop.f32.mrf.mxu0
          %v1031 = vadd.f32 0.0, %v1030
          %v1032 = vpop.f32.mrf.mxu0
          %1033 = vmatprep.mubr.f32.mxu0 0.0
          %1034 = vmatmul.mubr.f32.gmra.mxu0 %v956
          %v1035 = vpop.f32.mrf.mxu0
          %v1036 = vadd.f32 0.0, %v1035
          %v1037 = vpop.f32.mrf.mxu0
          %1038 = vmatprep.mubr.f32.mxu0 0.0
          %1039 = vmatmul.mubr.f32.gmra.mxu0 %v959
          %v1040 = vpop.f32.mrf.mxu0
          %v1041 = vadd.f32 0.0, %v1040
          %v1042 = vpop.f32.mrf.mxu0
          %1043 = vmatprep.mubr.f32.mxu0 0.0
          %1044 = vmatmul.mubr.f32.gmra.mxu0 %v962
          %v1045 = vpop.f32.mrf.mxu0
          %v1046 = vadd.f32 0.0, %v1045
          %v1047 = vpop.f32.mrf.mxu0
          %1048 = vdwg.mxu0
          %v1050 = vsel %vm377, %v1031, 0
          %v1053 = vsel %vm377, %v1036, 0
          %v1056 = vsel %vm377, %v1041, 0
          %v1059 = vsel %vm377, %v1046, 0
          %1061 = vmatprep.subr.mxu0 0.0
          %1062 = vmatpush1.msra.mxu0 0.0
          %1063 = vmatprep.subr.mxu0 0.0
          %1064 = vmatpush1.msra.mxu0 0.0
          %1065 = vmatprep.subr.mxu0 0.0
          %1066 = vmatpush1.msra.mxu0 0.0
          %1067 = vmatprep.subr.mxu0 0.0
          %1068 = vmatpush1.msra.mxu0 0.0
          %1069 = vmatprep.subr.mxu0 0.0
          %1070 = vmatpush1.msra.mxu0 0.0
          %1071 = vmatprep.subr.mxu0 0.0
          %1072 = vmatpush1.msra.mxu0 0.0
          %1073 = vmatprep.subr.mxu0 0.0
          %1074 = vmatpush1.msra.mxu0 0.0
          %1075 = vmatprep.subr.mxu0 0.0
          %1076 = vmatpush1.msra.mxu0 0.0
          %1077 = vmatprep.subr.mxu0 0.0
          %1078 = vmatpush1.msra.mxu0 0.0
          %1079 = vmatprep.subr.mxu0 0.0
          %1080 = vmatpush1.msra.mxu0 0.0
          %1081 = vmatprep.subr.mxu0 0.0
          %1082 = vmatpush1.msra.mxu0 0.0
          %1083 = vmatprep.subr.mxu0 0.0
          %1084 = vmatpush1.msra.mxu0 0.0
          %1085 = vmatprep.subr.mxu0 0.0
          %1086 = vmatpush1.msra.mxu0 %v949
          %1087 = vmatprep.subr.mxu0 0.0
          %1088 = vmatpush1.msra.mxu0 %v944
          %1089 = vmatprep.subr.mxu0 0.0
          %1090 = vmatpush1.msra.mxu0 %v939
          %1091 = vmatprep.subr.mxu0 0.0
          %1092 = vmatpush1.msra.mxu0 %v934
          %1093 = vmatprep.subr.mxu0 0.0
          %1094 = vmatpush2.msra.mxu0 0.0
          %1095 = vmatprep.subr.mxu0 0.0
          %1096 = vmatpush2.msra.mxu0 0.0
          %1097 = vmatprep.subr.mxu0 0.0
          %1098 = vmatpush2.msra.mxu0 0.0
          %1099 = vmatprep.subr.mxu0 0.0
          %1100 = vmatpush2.msra.mxu0 0.0
          %1101 = vmatprep.subr.mxu0 0.0
          %1102 = vmatpush2.msra.mxu0 0.0
          %1103 = vmatprep.subr.mxu0 0.0
          %1104 = vmatpush2.msra.mxu0 0.0
          %1105 = vmatprep.subr.mxu0 0.0
          %1106 = vmatpush2.msra.mxu0 0.0
          %1107 = vmatprep.subr.mxu0 0.0
          %1108 = vmatpush2.msra.mxu0 0.0
          %1109 = vmatprep.subr.mxu0 0.0
          %1110 = vmatpush2.msra.mxu0 0.0
          %1111 = vmatprep.subr.mxu0 0.0
          %1112 = vmatpush2.msra.mxu0 0.0
          %1113 = vmatprep.subr.mxu0 0.0
          %1114 = vmatpush2.msra.mxu0 0.0
          %1115 = vmatprep.subr.mxu0 0.0
          %1116 = vmatpush2.msra.mxu0 0.0
          %1117 = vmatprep.subr.mxu0 0.0
          %1118 = vmatpush2.msra.mxu0 0.0
          %1119 = vmatprep.subr.mxu0 0.0
          %1120 = vmatpush2.msra.mxu0 0.0
          %1121 = vmatprep.subr.mxu0 0.0
          %1122 = vmatpush2.msra.mxu0 0.0
          %1123 = vmatprep.subr.mxu0 0.0
          %1124 = vmatpush2.msra.mxu0 0.0
          %1125 = vmatprep.mubr.f32.mxu0 0.0
          %1126 = vmatmul.mubr.f32.gmra.mxu0 %v1050
          %v1127 = vpop.f32.mrf.mxu0
          %v1128 = vadd.f32 0.0, %v1127
          %v1129 = vpop.f32.mrf.mxu0
          %1130 = vmatprep.mubr.f32.mxu0 0.0
          %1131 = vmatmul.mubr.f32.gmra.mxu0 %v1053
          %v1132 = vpop.f32.mrf.mxu0
          %v1133 = vadd.f32 0.0, %v1132
          %v1134 = vpop.f32.mrf.mxu0
          %1135 = vmatprep.mubr.f32.mxu0 0.0
          %1136 = vmatmul.mubr.f32.gmra.mxu0 %v1056
          %v1137 = vpop.f32.mrf.mxu0
          %v1138 = vadd.f32 0.0, %v1137
          %v1139 = vpop.f32.mrf.mxu0
          %1140 = vmatprep.mubr.f32.mxu0 0.0
          %1141 = vmatmul.mubr.f32.gmra.mxu0 %v1059
          %v1142 = vpop.f32.mrf.mxu0
          %v1143 = vadd.f32 0.0, %v1142
          %v1144 = vpop.f32.mrf.mxu0
          %1145 = vdwg.mxu0
          %v1146 = vsub.f32 %v615, %v1128
          %v1147 = vsub.f32 %v616, %v1133
          %v1148 = vsub.f32 %v617, %v1138
          %v1149 = vsub.f32 %v618, %v1143
          %v1150 = vmul.f32 %v1146, 0.5
          %v1151 = vmul.f32 %v1147, 0.5
          %v1152 = vmul.f32 %v1148, 0.5
          %v1153 = vmul.f32 %v1149, 0.5
          %v1155 = vsel %vm377, %v934, 0
          %v1158 = vsel %vm377, %v939, 0
          %v1161 = vsel %vm377, %v944, 0
          %v1164 = vsel %vm377, %v949, 0
          %1166 = vmatprep.subr.mxu0 0.0
          %1167 = vmatpush1.msra.mxu0 0.0
          %1168 = vmatprep.subr.mxu0 0.0
          %1169 = vmatpush1.msra.mxu0 0.0
          %1170 = vmatprep.subr.mxu0 0.0
          %1171 = vmatpush1.msra.mxu0 0.0
          %1172 = vmatprep.subr.mxu0 0.0
          %1173 = vmatpush1.msra.mxu0 0.0
          %1174 = vmatprep.subr.mxu0 0.0
          %1175 = vmatpush1.msra.mxu0 0.0
          %1176 = vmatprep.subr.mxu0 0.0
          %1177 = vmatpush1.msra.mxu0 0.0
          %1178 = vmatprep.subr.mxu0 0.0
          %1179 = vmatpush1.msra.mxu0 0.0
          %1180 = vmatprep.subr.mxu0 0.0
          %1181 = vmatpush1.msra.mxu0 0.0
          %1182 = vmatprep.subr.mxu0 0.0
          %1183 = vmatpush1.msra.mxu0 0.0
          %1184 = vmatprep.subr.mxu0 0.0
          %1185 = vmatpush1.msra.mxu0 0.0
          %1186 = vmatprep.subr.mxu0 0.0
          %1187 = vmatpush1.msra.mxu0 0.0
          %1188 = vmatprep.subr.mxu0 0.0
          %1189 = vmatpush1.msra.mxu0 0.0
          %1190 = vmatprep.subr.mxu0 0.0
          %1191 = vmatpush1.msra.mxu0 %v1153
          %1192 = vmatprep.subr.mxu0 0.0
          %1193 = vmatpush1.msra.mxu0 %v1152
          %1194 = vmatprep.subr.mxu0 0.0
          %1195 = vmatpush1.msra.mxu0 %v1151
          %1196 = vmatprep.subr.mxu0 0.0
          %1197 = vmatpush1.msra.mxu0 %v1150
          %1198 = vmatprep.subr.mxu0 0.0
          %1199 = vmatpush2.msra.mxu0 0.0
          %1200 = vmatprep.subr.mxu0 0.0
          %1201 = vmatpush2.msra.mxu0 0.0
          %1202 = vmatprep.subr.mxu0 0.0
          %1203 = vmatpush2.msra.mxu0 0.0
          %1204 = vmatprep.subr.mxu0 0.0
          %1205 = vmatpush2.msra.mxu0 0.0
          %1206 = vmatprep.subr.mxu0 0.0
          %1207 = vmatpush2.msra.mxu0 0.0
          %1208 = vmatprep.subr.mxu0 0.0
          %1209 = vmatpush2.msra.mxu0 0.0
          %1210 = vmatprep.subr.mxu0 0.0
          %1211 = vmatpush2.msra.mxu0 0.0
          %1212 = vmatprep.subr.mxu0 0.0
          %1213 = vmatpush2.msra.mxu0 0.0
          %1214 = vmatprep.subr.mxu0 0.0
          %1215 = vmatpush2.msra.mxu0 0.0
          %1216 = vmatprep.subr.mxu0 0.0
          %1217 = vmatpush2.msra.mxu0 0.0
          %1218 = vmatprep.subr.mxu0 0.0
          %1219 = vmatpush2.msra.mxu0 0.0
          %1220 = vmatprep.subr.mxu0 0.0
          %1221 = vmatpush2.msra.mxu0 0.0
          %1222 = vmatprep.subr.mxu0 0.0
          %1223 = vmatpush2.msra.mxu0 0.0
          %1224 = vmatprep.subr.mxu0 0.0
          %1225 = vmatpush2.msra.mxu0 0.0
          %1226 = vmatprep.subr.mxu0 0.0
          %1227 = vmatpush2.msra.mxu0 0.0
          %1228 = vmatprep.subr.mxu0 0.0
          %1229 = vmatpush2.msra.mxu0 0.0
          %1230 = vmatprep.mubr.f32.mxu0 0.0
          %1231 = vmatmul.mubr.f32.gmra.mxu0 %v1155
          %v1232 = vpop.f32.mrf.mxu0
          %v1233 = vadd.f32 0.0, %v1232
          %v1234 = vpop.f32.mrf.mxu0
          %1235 = vmatprep.mubr.f32.mxu0 0.0
          %1236 = vmatmul.mubr.f32.gmra.mxu0 %v1158
          %v1237 = vpop.f32.mrf.mxu0
          %v1238 = vadd.f32 0.0, %v1237
          %v1239 = vpop.f32.mrf.mxu0
          %1240 = vmatprep.mubr.f32.mxu0 0.0
          %1241 = vmatmul.mubr.f32.gmra.mxu0 %v1161
          %v1242 = vpop.f32.mrf.mxu0
          %v1243 = vadd.f32 0.0, %v1242
          %v1244 = vpop.f32.mrf.mxu0
          %1245 = vmatprep.mubr.f32.mxu0 0.0
          %1246 = vmatmul.mubr.f32.gmra.mxu0 %v1164
          %v1247 = vpop.f32.mrf.mxu0
          %v1248 = vadd.f32 0.0, %v1247
          %v1249 = vpop.f32.mrf.mxu0
          %1250 = vdwg.mxu0
          %v1252 = vsel %vm377, %v1150, 0
          %v1255 = vsel %vm377, %v1151, 0
          %v1258 = vsel %vm377, %v1152, 0
          %v1261 = vsel %vm377, %v1153, 0
          %1263 = vmatprep.subr.mxu0 0.0
          %1264 = vmatpush1.msra.mxu0 0.0
          %1265 = vmatprep.subr.mxu0 0.0
          %1266 = vmatpush1.msra.mxu0 0.0
          %1267 = vmatprep.subr.mxu0 0.0
          %1268 = vmatpush1.msra.mxu0 0.0
          %1269 = vmatprep.subr.mxu0 0.0
          %1270 = vmatpush1.msra.mxu0 0.0
          %1271 = vmatprep.subr.mxu0 0.0
          %1272 = vmatpush1.msra.mxu0 0.0
          %1273 = vmatprep.subr.mxu0 0.0
          %1274 = vmatpush1.msra.mxu0 0.0
          %1275 = vmatprep.subr.mxu0 0.0
          %1276 = vmatpush1.msra.mxu0 0.0
          %1277 = vmatprep.subr.mxu0 0.0
          %1278 = vmatpush1.msra.mxu0 0.0
          %1279 = vmatprep.subr.mxu0 0.0
          %1280 = vmatpush1.msra.mxu0 0.0
          %1281 = vmatprep.subr.mxu0 0.0
          %1282 = vmatpush1.msra.mxu0 0.0
          %1283 = vmatprep.subr.mxu0 0.0
          %1284 = vmatpush1.msra.mxu0 0.0
          %1285 = vmatprep.subr.mxu0 0.0
          %1286 = vmatpush1.msra.mxu0 0.0
          %1287 = vmatprep.subr.mxu0 0.0
          %1288 = vmatpush1.msra.mxu0 %v1046
          %1289 = vmatprep.subr.mxu0 0.0
          %1290 = vmatpush1.msra.mxu0 %v1041
          %1291 = vmatprep.subr.mxu0 0.0
          %1292 = vmatpush1.msra.mxu0 %v1036
          %1293 = vmatprep.subr.mxu0 0.0
          %1294 = vmatpush1.msra.mxu0 %v1031
          %1295 = vmatprep.subr.mxu0 0.0
          %1296 = vmatpush2.msra.mxu0 0.0
          %1297 = vmatprep.subr.mxu0 0.0
          %1298 = vmatpush2.msra.mxu0 0.0
          %1299 = vmatprep.subr.mxu0 0.0
          %1300 = vmatpush2.msra.mxu0 0.0
          %1301 = vmatprep.subr.mxu0 0.0
          %1302 = vmatpush2.msra.mxu0 0.0
          %1303 = vmatprep.subr.mxu0 0.0
          %1304 = vmatpush2.msra.mxu0 0.0
          %1305 = vmatprep.subr.mxu0 0.0
          %1306 = vmatpush2.msra.mxu0 0.0
          %1307 = vmatprep.subr.mxu0 0.0
          %1308 = vmatpush2.msra.mxu0 0.0
          %1309 = vmatprep.subr.mxu0 0.0
          %1310 = vmatpush2.msra.mxu0 0.0
          %1311 = vmatprep.subr.mxu0 0.0
          %1312 = vmatpush2.msra.mxu0 0.0
          %1313 = vmatprep.subr.mxu0 0.0
          %1314 = vmatpush2.msra.mxu0 0.0
          %1315 = vmatprep.subr.mxu0 0.0
          %1316 = vmatpush2.msra.mxu0 0.0
          %1317 = vmatprep.subr.mxu0 0.0
          %1318 = vmatpush2.msra.mxu0 0.0
          %1319 = vmatprep.subr.mxu0 0.0
          %1320 = vmatpush2.msra.mxu0 0.0
          %1321 = vmatprep.subr.mxu0 0.0
          %1322 = vmatpush2.msra.mxu0 0.0
          %1323 = vmatprep.subr.mxu0 0.0
          %1324 = vmatpush2.msra.mxu0 0.0
          %1325 = vmatprep.subr.mxu0 0.0
          %1326 = vmatpush2.msra.mxu0 0.0
          %1327 = vmatprep.mubr.f32.mxu0 0.0
          %1328 = vmatmul.mubr.f32.gmra.mxu0 %v1252
          %v1329 = vpop.f32.mrf.mxu0
          %v1330 = vadd.f32 0.0, %v1329
          %v1331 = vpop.f32.mrf.mxu0
          %1332 = vmatprep.mubr.f32.mxu0 0.0
          %1333 = vmatmul.mubr.f32.gmra.mxu0 %v1255
          %v1334 = vpop.f32.mrf.mxu0
          %v1335 = vadd.f32 0.0, %v1334
          %v1336 = vpop.f32.mrf.mxu0
          %1337 = vmatprep.mubr.f32.mxu0 0.0
          %1338 = vmatmul.mubr.f32.gmra.mxu0 %v1258
          %v1339 = vpop.f32.mrf.mxu0
          %v1340 = vadd.f32 0.0, %v1339
          %v1341 = vpop.f32.mrf.mxu0
          %1342 = vmatprep.mubr.f32.mxu0 0.0
          %1343 = vmatmul.mubr.f32.gmra.mxu0 %v1261
          %v1344 = vpop.f32.mrf.mxu0
          %v1345 = vadd.f32 0.0, %v1344
          %v1346 = vpop.f32.mrf.mxu0
          %1347 = vdwg.mxu0
          %v1349 = vsel %vm377, %v1330, 0
          %v1352 = vsel %vm377, %v1335, 0
          %v1355 = vsel %vm377, %v1340, 0
          %v1358 = vsel %vm377, %v1345, 0
          %1360 = vmatprep.subr.mxu0 0.0
          %1361 = vmatpush1.msra.mxu0 0.0
          %1362 = vmatprep.subr.mxu0 0.0
          %1363 = vmatpush1.msra.mxu0 0.0
          %1364 = vmatprep.subr.mxu0 0.0
          %1365 = vmatpush1.msra.mxu0 0.0
          %1366 = vmatprep.subr.mxu0 0.0
          %1367 = vmatpush1.msra.mxu0 0.0
          %1368 = vmatprep.subr.mxu0 0.0
          %1369 = vmatpush1.msra.mxu0 0.0
          %1370 = vmatprep.subr.mxu0 0.0
          %1371 = vmatpush1.msra.mxu0 0.0
          %1372 = vmatprep.subr.mxu0 0.0
          %1373 = vmatpush1.msra.mxu0 0.0
          %1374 = vmatprep.subr.mxu0 0.0
          %1375 = vmatpush1.msra.mxu0 0.0
          %1376 = vmatprep.subr.mxu0 0.0
          %1377 = vmatpush1.msra.mxu0 0.0
          %1378 = vmatprep.subr.mxu0 0.0
          %1379 = vmatpush1.msra.mxu0 0.0
          %1380 = vmatprep.subr.mxu0 0.0
          %1381 = vmatpush1.msra.mxu0 0.0
          %1382 = vmatprep.subr.mxu0 0.0
          %1383 = vmatpush1.msra.mxu0 0.0
          %1384 = vmatprep.subr.mxu0 0.0
          %1385 = vmatpush1.msra.mxu0 %v1248
          %1386 = vmatprep.subr.mxu0 0.0
          %1387 = vmatpush1.msra.mxu0 %v1243
          %1388 = vmatprep.subr.mxu0 0.0
          %1389 = vmatpush1.msra.mxu0 %v1238
          %1390 = vmatprep.subr.mxu0 0.0
          %1391 = vmatpush1.msra.mxu0 %v1233
          %1392 = vmatprep.subr.mxu0 0.0
          %1393 = vmatpush2.msra.mxu0 0.0
          %1394 = vmatprep.subr.mxu0 0.0
          %1395 = vmatpush2.msra.mxu0 0.0
          %1396 = vmatprep.subr.mxu0 0.0
          %1397 = vmatpush2.msra.mxu0 0.0
          %1398 = vmatprep.subr.mxu0 0.0
          %1399 = vmatpush2.msra.mxu0 0.0
          %1400 = vmatprep.subr.mxu0 0.0
          %1401 = vmatpush2.msra.mxu0 0.0
          %1402 = vmatprep.subr.mxu0 0.0
          %1403 = vmatpush2.msra.mxu0 0.0
          %1404 = vmatprep.subr.mxu0 0.0
          %1405 = vmatpush2.msra.mxu0 0.0
          %1406 = vmatprep.subr.mxu0 0.0
          %1407 = vmatpush2.msra.mxu0 0.0
          %1408 = vmatprep.subr.mxu0 0.0
          %1409 = vmatpush2.msra.mxu0 0.0
          %1410 = vmatprep.subr.mxu0 0.0
          %1411 = vmatpush2.msra.mxu0 0.0
          %1412 = vmatprep.subr.mxu0 0.0
          %1413 = vmatpush2.msra.mxu0 0.0
          %1414 = vmatprep.subr.mxu0 0.0
          %1415 = vmatpush2.msra.mxu0 0.0
          %1416 = vmatprep.subr.mxu0 0.0
          %1417 = vmatpush2.msra.mxu0 0.0
          %1418 = vmatprep.subr.mxu0 0.0
          %1419 = vmatpush2.msra.mxu0 0.0
          %1420 = vmatprep.subr.mxu0 0.0
          %1421 = vmatpush2.msra.mxu0 0.0
          %1422 = vmatprep.subr.mxu0 0.0
          %1423 = vmatpush2.msra.mxu0 0.0
          %1424 = vmatprep.mubr.f32.mxu0 0.0
          %1425 = vmatmul.mubr.f32.gmra.mxu0 %v1349
          %v1426 = vpop.f32.mrf.mxu0
          %v1427 = vadd.f32 0.0, %v1426
          %v1428 = vpop.f32.mrf.mxu0
          %1429 = vmatprep.mubr.f32.mxu0 0.0
          %1430 = vmatmul.mubr.f32.gmra.mxu0 %v1352
          %v1431 = vpop.f32.mrf.mxu0
          %v1432 = vadd.f32 0.0, %v1431
          %v1433 = vpop.f32.mrf.mxu0
          %1434 = vmatprep.mubr.f32.mxu0 0.0
          %1435 = vmatmul.mubr.f32.gmra.mxu0 %v1355
          %v1436 = vpop.f32.mrf.mxu0
          %v1437 = vadd.f32 0.0, %v1436
          %v1438 = vpop.f32.mrf.mxu0
          %1439 = vmatprep.mubr.f32.mxu0 0.0
          %1440 = vmatmul.mubr.f32.gmra.mxu0 %v1358
          %v1441 = vpop.f32.mrf.mxu0
          %v1442 = vadd.f32 0.0, %v1441
          %v1443 = vpop.f32.mrf.mxu0
          %1444 = vdwg.mxu0
          %v1445 = vsub.f32 %v615, %v1427
          %v1446 = vsub.f32 %v616, %v1432
          %v1447 = vsub.f32 %v617, %v1437
          %v1448 = vsub.f32 %v618, %v1442
          %v1449 = vmul.f32 %v1445, 0.5
          %v1450 = vmul.f32 %v1446, 0.5
          %v1451 = vmul.f32 %v1447, 0.5
          %v1452 = vmul.f32 %v1448, 0.5
          %v1454 = vsel %vm377, %v1233, 0
          %v1457 = vsel %vm377, %v1238, 0
          %v1460 = vsel %vm377, %v1243, 0
          %v1463 = vsel %vm377, %v1248, 0
          %1465 = vmatprep.subr.mxu0 0.0
          %1466 = vmatpush1.msra.mxu0 0.0
          %1467 = vmatprep.subr.mxu0 0.0
          %1468 = vmatpush1.msra.mxu0 0.0
          %1469 = vmatprep.subr.mxu0 0.0
          %1470 = vmatpush1.msra.mxu0 0.0
          %1471 = vmatprep.subr.mxu0 0.0
          %1472 = vmatpush1.msra.mxu0 0.0
          %1473 = vmatprep.subr.mxu0 0.0
          %1474 = vmatpush1.msra.mxu0 0.0
          %1475 = vmatprep.subr.mxu0 0.0
          %1476 = vmatpush1.msra.mxu0 0.0
          %1477 = vmatprep.subr.mxu0 0.0
          %1478 = vmatpush1.msra.mxu0 0.0
          %1479 = vmatprep.subr.mxu0 0.0
          %1480 = vmatpush1.msra.mxu0 0.0
          %1481 = vmatprep.subr.mxu0 0.0
          %1482 = vmatpush1.msra.mxu0 0.0
          %1483 = vmatprep.subr.mxu0 0.0
          %1484 = vmatpush1.msra.mxu0 0.0
          %1485 = vmatprep.subr.mxu0 0.0
          %1486 = vmatpush1.msra.mxu0 0.0
          %1487 = vmatprep.subr.mxu0 0.0
          %1488 = vmatpush1.msra.mxu0 0.0
          %1489 = vmatprep.subr.mxu0 0.0
          %1490 = vmatpush1.msra.mxu0 %v1452
          %1491 = vmatprep.subr.mxu0 0.0
          %1492 = vmatpush1.msra.mxu0 %v1451
          %1493 = vmatprep.subr.mxu0 0.0
          %1494 = vmatpush1.msra.mxu0 %v1450
          %1495 = vmatprep.subr.mxu0 0.0
          %1496 = vmatpush1.msra.mxu0 %v1449
          %1497 = vmatprep.subr.mxu0 0.0
          %1498 = vmatpush2.msra.mxu0 0.0
          %1499 = vmatprep.subr.mxu0 0.0
          %1500 = vmatpush2.msra.mxu0 0.0
          %1501 = vmatprep.subr.mxu0 0.0
          %1502 = vmatpush2.msra.mxu0 0.0
          %1503 = vmatprep.subr.mxu0 0.0
          %1504 = vmatpush2.msra.mxu0 0.0
          %1505 = vmatprep.subr.mxu0 0.0
          %1506 = vmatpush2.msra.mxu0 0.0
          %1507 = vmatprep.subr.mxu0 0.0
          %1508 = vmatpush2.msra.mxu0 0.0
          %1509 = vmatprep.subr.mxu0 0.0
          %1510 = vmatpush2.msra.mxu0 0.0
          %1511 = vmatprep.subr.mxu0 0.0
          %1512 = vmatpush2.msra.mxu0 0.0
          %1513 = vmatprep.subr.mxu0 0.0
          %1514 = vmatpush2.msra.mxu0 0.0
          %1515 = vmatprep.subr.mxu0 0.0
          %1516 = vmatpush2.msra.mxu0 0.0
          %1517 = vmatprep.subr.mxu0 0.0
          %1518 = vmatpush2.msra.mxu0 0.0
          %1519 = vmatprep.subr.mxu0 0.0
          %1520 = vmatpush2.msra.mxu0 0.0
          %1521 = vmatprep.subr.mxu0 0.0
          %1522 = vmatpush2.msra.mxu0 0.0
          %1523 = vmatprep.subr.mxu0 0.0
          %1524 = vmatpush2.msra.mxu0 0.0
          %1525 = vmatprep.subr.mxu0 0.0
          %1526 = vmatpush2.msra.mxu0 0.0
          %1527 = vmatprep.subr.mxu0 0.0
          %1528 = vmatpush2.msra.mxu0 0.0
          %1529 = vmatprep.mubr.f32.mxu0 0.0
          %1530 = vmatmul.mubr.f32.gmra.mxu0 %v1454
          %v1531 = vpop.f32.mrf.mxu0
          %v1532 = vadd.f32 0.0, %v1531
          %v1533 = vpop.f32.mrf.mxu0
          %1534 = vmatprep.mubr.f32.mxu0 0.0
          %1535 = vmatmul.mubr.f32.gmra.mxu0 %v1457
          %v1536 = vpop.f32.mrf.mxu0
          %v1537 = vadd.f32 0.0, %v1536
          %v1538 = vpop.f32.mrf.mxu0
          %1539 = vmatprep.mubr.f32.mxu0 0.0
          %1540 = vmatmul.mubr.f32.gmra.mxu0 %v1460
          %v1541 = vpop.f32.mrf.mxu0
          %v1542 = vadd.f32 0.0, %v1541
          %v1543 = vpop.f32.mrf.mxu0
          %1544 = vmatprep.mubr.f32.mxu0 0.0
          %1545 = vmatmul.mubr.f32.gmra.mxu0 %v1463
          %v1546 = vpop.f32.mrf.mxu0
          %v1547 = vadd.f32 0.0, %v1546
          %v1548 = vpop.f32.mrf.mxu0
          %1549 = vdwg.mxu0
          %v1551 = vsel %vm377, %v1449, 0
          %v1554 = vsel %vm377, %v1450, 0
          %v1557 = vsel %vm377, %v1451, 0
          %v1560 = vsel %vm377, %v1452, 0
          %1562 = vmatprep.subr.mxu0 0.0
          %1563 = vmatpush1.msra.mxu0 0.0
          %1564 = vmatprep.subr.mxu0 0.0
          %1565 = vmatpush1.msra.mxu0 0.0
          %1566 = vmatprep.subr.mxu0 0.0
          %1567 = vmatpush1.msra.mxu0 0.0
          %1568 = vmatprep.subr.mxu0 0.0
          %1569 = vmatpush1.msra.mxu0 0.0
          %1570 = vmatprep.subr.mxu0 0.0
          %1571 = vmatpush1.msra.mxu0 0.0
          %1572 = vmatprep.subr.mxu0 0.0
          %1573 = vmatpush1.msra.mxu0 0.0
          %1574 = vmatprep.subr.mxu0 0.0
          %1575 = vmatpush1.msra.mxu0 0.0
          %1576 = vmatprep.subr.mxu0 0.0
          %1577 = vmatpush1.msra.mxu0 0.0
          %1578 = vmatprep.subr.mxu0 0.0
          %1579 = vmatpush1.msra.mxu0 0.0
          %1580 = vmatprep.subr.mxu0 0.0
          %1581 = vmatpush1.msra.mxu0 0.0
          %1582 = vmatprep.subr.mxu0 0.0
          %1583 = vmatpush1.msra.mxu0 0.0
          %1584 = vmatprep.subr.mxu0 0.0
          %1585 = vmatpush1.msra.mxu0 0.0
          %1586 = vmatprep.subr.mxu0 0.0
          %1587 = vmatpush1.msra.mxu0 %v1345
          %1588 = vmatprep.subr.mxu0 0.0
          %1589 = vmatpush1.msra.mxu0 %v1340
          %1590 = vmatprep.subr.mxu0 0.0
          %1591 = vmatpush1.msra.mxu0 %v1335
          %1592 = vmatprep.subr.mxu0 0.0
          %1593 = vmatpush1.msra.mxu0 %v1330
          %1594 = vmatprep.subr.mxu0 0.0
          %1595 = vmatpush2.msra.mxu0 0.0
          %1596 = vmatprep.subr.mxu0 0.0
          %1597 = vmatpush2.msra.mxu0 0.0
          %1598 = vmatprep.subr.mxu0 0.0
          %1599 = vmatpush2.msra.mxu0 0.0
          %1600 = vmatprep.subr.mxu0 0.0
          %1601 = vmatpush2.msra.mxu0 0.0
          %1602 = vmatprep.subr.mxu0 0.0
          %1603 = vmatpush2.msra.mxu0 0.0
          %1604 = vmatprep.subr.mxu0 0.0
          %1605 = vmatpush2.msra.mxu0 0.0
          %1606 = vmatprep.subr.mxu0 0.0
          %1607 = vmatpush2.msra.mxu0 0.0
          %1608 = vmatprep.subr.mxu0 0.0
          %1609 = vmatpush2.msra.mxu0 0.0
          %1610 = vmatprep.subr.mxu0 0.0
          %1611 = vmatpush2.msra.mxu0 0.0
          %1612 = vmatprep.subr.mxu0 0.0
          %1613 = vmatpush2.msra.mxu0 0.0
          %1614 = vmatprep.subr.mxu0 0.0
          %1615 = vmatpush2.msra.mxu0 0.0
          %1616 = vmatprep.subr.mxu0 0.0
          %1617 = vmatpush2.msra.mxu0 0.0
          %1618 = vmatprep.subr.mxu0 0.0
          %1619 = vmatpush2.msra.mxu0 0.0
          %1620 = vmatprep.subr.mxu0 0.0
          %1621 = vmatpush2.msra.mxu0 0.0
          %1622 = vmatprep.subr.mxu0 0.0
          %1623 = vmatpush2.msra.mxu0 0.0
          %1624 = vmatprep.subr.mxu0 0.0
          %1625 = vmatpush2.msra.mxu0 0.0
          %1626 = vmatprep.mubr.f32.mxu0 0.0
          %1627 = vmatmul.mubr.f32.gmra.mxu0 %v1551
          %v1628 = vpop.f32.mrf.mxu0
          %v1629 = vadd.f32 0.0, %v1628
          %v1630 = vpop.f32.mrf.mxu0
          %1631 = vmatprep.mubr.f32.mxu0 0.0
          %1632 = vmatmul.mubr.f32.gmra.mxu0 %v1554
          %v1633 = vpop.f32.mrf.mxu0
          %v1634 = vadd.f32 0.0, %v1633
          %v1635 = vpop.f32.mrf.mxu0
          %1636 = vmatprep.mubr.f32.mxu0 0.0
          %1637 = vmatmul.mubr.f32.gmra.mxu0 %v1557
          %v1638 = vpop.f32.mrf.mxu0
          %v1639 = vadd.f32 0.0, %v1638
          %v1640 = vpop.f32.mrf.mxu0
          %1641 = vmatprep.mubr.f32.mxu0 0.0
          %1642 = vmatmul.mubr.f32.gmra.mxu0 %v1560
          %v1643 = vpop.f32.mrf.mxu0
          %v1644 = vadd.f32 0.0, %v1643
          %v1645 = vpop.f32.mrf.mxu0
          %1646 = vdwg.mxu0
          %v1648 = vsel %vm377, %v1629, 0
          %v1651 = vsel %vm377, %v1634, 0
          %v1654 = vsel %vm377, %v1639, 0
          %v1657 = vsel %vm377, %v1644, 0
          %1659 = vmatprep.subr.mxu0 0.0
          %1660 = vmatpush1.msra.mxu0 0.0
          %1661 = vmatprep.subr.mxu0 0.0
          %1662 = vmatpush1.msra.mxu0 0.0
          %1663 = vmatprep.subr.mxu0 0.0
          %1664 = vmatpush1.msra.mxu0 0.0
          %1665 = vmatprep.subr.mxu0 0.0
          %1666 = vmatpush1.msra.mxu0 0.0
          %1667 = vmatprep.subr.mxu0 0.0
          %1668 = vmatpush1.msra.mxu0 0.0
          %1669 = vmatprep.subr.mxu0 0.0
          %1670 = vmatpush1.msra.mxu0 0.0
          %1671 = vmatprep.subr.mxu0 0.0
          %1672 = vmatpush1.msra.mxu0 0.0
          %1673 = vmatprep.subr.mxu0 0.0
          %1674 = vmatpush1.msra.mxu0 0.0
          %1675 = vmatprep.subr.mxu0 0.0
          %1676 = vmatpush1.msra.mxu0 0.0
          %1677 = vmatprep.subr.mxu0 0.0
          %1678 = vmatpush1.msra.mxu0 0.0
          %1679 = vmatprep.subr.mxu0 0.0
          %1680 = vmatpush1.msra.mxu0 0.0
          %1681 = vmatprep.subr.mxu0 0.0
          %1682 = vmatpush1.msra.mxu0 0.0
          %1683 = vmatprep.subr.mxu0 0.0
          %1684 = vmatpush1.msra.mxu0 %v1547
          %1685 = vmatprep.subr.mxu0 0.0
          %1686 = vmatpush1.msra.mxu0 %v1542
          %1687 = vmatprep.subr.mxu0 0.0
          %1688 = vmatpush1.msra.mxu0 %v1537
          %1689 = vmatprep.subr.mxu0 0.0
          %1690 = vmatpush1.msra.mxu0 %v1532
          %1691 = vmatprep.subr.mxu0 0.0
          %1692 = vmatpush2.msra.mxu0 0.0
          %1693 = vmatprep.subr.mxu0 0.0
          %1694 = vmatpush2.msra.mxu0 0.0
          %1695 = vmatprep.subr.mxu0 0.0
          %1696 = vmatpush2.msra.mxu0 0.0
          %1697 = vmatprep.subr.mxu0 0.0
          %1698 = vmatpush2.msra.mxu0 0.0
          %1699 = vmatprep.subr.mxu0 0.0
          %1700 = vmatpush2.msra.mxu0 0.0
          %1701 = vmatprep.subr.mxu0 0.0
          %1702 = vmatpush2.msra.mxu0 0.0
          %1703 = vmatprep.subr.mxu0 0.0
          %1704 = vmatpush2.msra.mxu0 0.0
          %1705 = vmatprep.subr.mxu0 0.0
          %1706 = vmatpush2.msra.mxu0 0.0
          %1707 = vmatprep.subr.mxu0 0.0
          %1708 = vmatpush2.msra.mxu0 0.0
          %1709 = vmatprep.subr.mxu0 0.0
          %1710 = vmatpush2.msra.mxu0 0.0
          %1711 = vmatprep.subr.mxu0 0.0
          %1712 = vmatpush2.msra.mxu0 0.0
          %1713 = vmatprep.subr.mxu0 0.0
          %1714 = vmatpush2.msra.mxu0 0.0
          %1715 = vmatprep.subr.mxu0 0.0
          %1716 = vmatpush2.msra.mxu0 0.0
          %1717 = vmatprep.subr.mxu0 0.0
          %1718 = vmatpush2.msra.mxu0 0.0
          %1719 = vmatprep.subr.mxu0 0.0
          %1720 = vmatpush2.msra.mxu0 0.0
          %1721 = vmatprep.subr.mxu0 0.0
          %1722 = vmatpush2.msra.mxu0 0.0
          %1723 = vmatprep.mubr.f32.mxu0 0.0
          %1724 = vmatmul.mubr.f32.gmra.mxu0 %v1648
          %v1725 = vpop.f32.mrf.mxu0
          %v1726 = vadd.f32 0.0, %v1725
          %v1727 = vpop.f32.mrf.mxu0
          %1728 = vmatprep.mubr.f32.mxu0 0.0
          %1729 = vmatmul.mubr.f32.gmra.mxu0 %v1651
          %v1730 = vpop.f32.mrf.mxu0
          %v1731 = vadd.f32 0.0, %v1730
          %v1732 = vpop.f32.mrf.mxu0
          %1733 = vmatprep.mubr.f32.mxu0 0.0
          %1734 = vmatmul.mubr.f32.gmra.mxu0 %v1654
          %v1735 = vpop.f32.mrf.mxu0
          %v1736 = vadd.f32 0.0, %v1735
          %v1737 = vpop.f32.mrf.mxu0
          %1738 = vmatprep.mubr.f32.mxu0 0.0
          %1739 = vmatmul.mubr.f32.gmra.mxu0 %v1657
          %v1740 = vpop.f32.mrf.mxu0
          %v1741 = vadd.f32 0.0, %v1740
          %v1742 = vpop.f32.mrf.mxu0
          %1743 = vdwg.mxu0
          %v1744 = vsub.f32 %v615, %v1726
          %v1745 = vsub.f32 %v616, %v1731
          %v1746 = vsub.f32 %v617, %v1736
          %v1747 = vsub.f32 %v618, %v1741
          %v1749 = vsel %vm377, %v1532, 0
          %v1752 = vsel %vm377, %v1537, 0
          %v1755 = vsel %vm377, %v1542, 0
          %v1758 = vsel %vm377, %v1547, 0
          %1760 = vmatprep.subr.mxu0 0.0
          %1761 = vmatpush1.msra.mxu0 0.0
          %1762 = vmatprep.subr.mxu0 0.0
          %1763 = vmatpush1.msra.mxu0 0.0
          %1764 = vmatprep.subr.mxu0 0.0
          %1765 = vmatpush1.msra.mxu0 0.0
          %1766 = vmatprep.subr.mxu0 0.0
          %1767 = vmatpush1.msra.mxu0 0.0
          %1768 = vmatprep.subr.mxu0 0.0
          %1769 = vmatpush1.msra.mxu0 0.0
          %1770 = vmatprep.subr.mxu0 0.0
          %1771 = vmatpush1.msra.mxu0 0.0
          %1772 = vmatprep.subr.mxu0 0.0
          %1773 = vmatpush1.msra.mxu0 0.0
          %1774 = vmatprep.subr.mxu0 0.0
          %1775 = vmatpush1.msra.mxu0 0.0
          %1776 = vmatprep.subr.mxu0 0.0
          %1777 = vmatpush1.msra.mxu0 0.0
          %1778 = vmatprep.subr.mxu0 0.0
          %1779 = vmatpush1.msra.mxu0 0.0
          %1780 = vmatprep.subr.mxu0 0.0
          %1781 = vmatpush1.msra.mxu0 0.0
          %1782 = vmatprep.subr.mxu0 0.0
          %1783 = vmatpush1.msra.mxu0 0.0
          %1784 = vmatprep.subr.mxu0 0.0
          %1785 = vmatpush1.msra.mxu0 %v1747
          %1786 = vmatprep.subr.mxu0 0.0
          %1787 = vmatpush1.msra.mxu0 %v1746
          %1788 = vmatprep.subr.mxu0 0.0
          %1789 = vmatpush1.msra.mxu0 %v1745
          %1790 = vmatprep.subr.mxu0 0.0
          %1791 = vmatpush1.msra.mxu0 %v1744
          %1792 = vmatprep.subr.mxu0 0.0
          %1793 = vmatpush2.msra.mxu0 0.0
          %1794 = vmatprep.subr.mxu0 0.0
          %1795 = vmatpush2.msra.mxu0 0.0
          %1796 = vmatprep.subr.mxu0 0.0
          %1797 = vmatpush2.msra.mxu0 0.0
          %1798 = vmatprep.subr.mxu0 0.0
          %1799 = vmatpush2.msra.mxu0 0.0
          %1800 = vmatprep.subr.mxu0 0.0
          %1801 = vmatpush2.msra.mxu0 0.0
          %1802 = vmatprep.subr.mxu0 0.0
          %1803 = vmatpush2.msra.mxu0 0.0
          %1804 = vmatprep.subr.mxu0 0.0
          %1805 = vmatpush2.msra.mxu0 0.0
          %1806 = vmatprep.subr.mxu0 0.0
          %1807 = vmatpush2.msra.mxu0 0.0
          %1808 = vmatprep.subr.mxu0 0.0
          %1809 = vmatpush2.msra.mxu0 0.0
          %1810 = vmatprep.subr.mxu0 0.0
          %1811 = vmatpush2.msra.mxu0 0.0
          %1812 = vmatprep.subr.mxu0 0.0
          %1813 = vmatpush2.msra.mxu0 0.0
          %1814 = vmatprep.subr.mxu0 0.0
          %1815 = vmatpush2.msra.mxu0 0.0
          %1816 = vmatprep.subr.mxu0 0.0
          %1817 = vmatpush2.msra.mxu0 0.0
          %1818 = vmatprep.subr.mxu0 0.0
          %1819 = vmatpush2.msra.mxu0 0.0
          %1820 = vmatprep.subr.mxu0 0.0
          %1821 = vmatpush2.msra.mxu0 0.0
          %1822 = vmatprep.subr.mxu0 0.0
          %1823 = vmatpush2.msra.mxu0 0.0
          %1824 = vmatprep.mubr.f32.mxu0 0.0
          %1825 = vmatmul.mubr.f32.gmra.mxu0 %v1749
          %v1826 = vpop.f32.mrf.mxu0
          %v1827 = vadd.f32 0.0, %v1826
          %v1828 = vpop.f32.mrf.mxu0
          %1829 = vmatprep.mubr.f32.mxu0 0.0
          %1830 = vmatmul.mubr.f32.gmra.mxu0 %v1752
          %v1831 = vpop.f32.mrf.mxu0
          %v1832 = vadd.f32 0.0, %v1831
          %v1833 = vpop.f32.mrf.mxu0
          %1834 = vmatprep.mubr.f32.mxu0 0.0
          %1835 = vmatmul.mubr.f32.gmra.mxu0 %v1755
          %v1836 = vpop.f32.mrf.mxu0
          %v1837 = vadd.f32 0.0, %v1836
          %v1838 = vpop.f32.mrf.mxu0
          %1839 = vmatprep.mubr.f32.mxu0 0.0
          %1840 = vmatmul.mubr.f32.gmra.mxu0 %v1758
          %v1841 = vpop.f32.mrf.mxu0
          %v1842 = vadd.f32 0.0, %v1841
          %v1843 = vpop.f32.mrf.mxu0
          %1844 = vdwg.mxu0
          %v1845 = vmul.f32 %v1827, 0.5
          %v1846 = vmul.f32 %v1832, 0.5
          %v1847 = vmul.f32 %v1837, 0.5
          %v1848 = vmul.f32 %v1842, 0.5
          %v1849 = vstv %s638
          %v1850 = vrsqrt.pop %v1849
          %v1851 = vmul.f32 %v1849, %v1850
          %vm1852 = vcmp.eq.f32.partialorder %v1849, inf
          %v1853 = vsel %vm1852, %v1849, %v1851
          %vm1854 = vcmp.eq.f32.partialorder %v1849, 0.0
          %v1855 = vand.u32 %v1849, 2147483648
          %v1856 = vsel %vm1854, %v1855, %v1853
          %s1857 = vtos %v1856
          %v1858 = vstv %s1857
          %v1859 = vmul.f32 %v1845, %v1858
          %v1860 = vmul.f32 %v1846, %v1858
          %v1861 = vmul.f32 %v1847, %v1858
          %v1862 = vmul.f32 %v1848, %v1858
          %v1864 = vsel %vm377, %v1859, 0
          %v1867 = vsel %vm377, %v1860, 0
          %v1870 = vsel %vm377, %v1861, 0
          %v1873 = vsel %vm377, %v1862, 0
          %1875 = vmatprep.subr.mxu0 0.0
          %1876 = vmatpush1.msra.mxu0 0.0
          %1877 = vmatprep.subr.mxu0 0.0
          %1878 = vmatpush1.msra.mxu0 0.0
          %1879 = vmatprep.subr.mxu0 0.0
          %1880 = vmatpush1.msra.mxu0 0.0
          %1881 = vmatprep.subr.mxu0 0.0
          %1882 = vmatpush1.msra.mxu0 0.0
          %1883 = vmatprep.subr.mxu0 0.0
          %1884 = vmatpush1.msra.mxu0 0.0
          %1885 = vmatprep.subr.mxu0 0.0
          %1886 = vmatpush1.msra.mxu0 0.0
          %1887 = vmatprep.subr.mxu0 0.0
          %1888 = vmatpush1.msra.mxu0 0.0
          %1889 = vmatprep.subr.mxu0 0.0
          %1890 = vmatpush1.msra.mxu0 0.0
          %1891 = vmatprep.subr.mxu0 0.0
          %1892 = vmatpush1.msra.mxu0 0.0
          %1893 = vmatprep.subr.mxu0 0.0
          %1894 = vmatpush1.msra.mxu0 0.0
          %1895 = vmatprep.subr.mxu0 0.0
          %1896 = vmatpush1.msra.mxu0 0.0
          %1897 = vmatprep.subr.mxu0 0.0
          %1898 = vmatpush1.msra.mxu0 0.0
          %1899 = vmatprep.subr.mxu0 0.0
          %1900 = vmatpush1.msra.mxu0 0.03125
          %1901 = vmatprep.subr.mxu0 0.0
          %1902 = vmatpush1.msra.mxu0 0.03125
          %1903 = vmatprep.subr.mxu0 0.0
          %1904 = vmatpush1.msra.mxu0 0.03125
          %1905 = vmatprep.subr.mxu0 0.0
          %1906 = vmatpush1.msra.mxu0 0.03125
          %1907 = vmatprep.subr.mxu0 0.0
          %1908 = vmatpush2.msra.mxu0 0.0
          %1909 = vmatprep.subr.mxu0 0.0
          %1910 = vmatpush2.msra.mxu0 0.0
          %1911 = vmatprep.subr.mxu0 0.0
          %1912 = vmatpush2.msra.mxu0 0.0
          %1913 = vmatprep.subr.mxu0 0.0
          %1914 = vmatpush2.msra.mxu0 0.0
          %1915 = vmatprep.subr.mxu0 0.0
          %1916 = vmatpush2.msra.mxu0 0.0
          %1917 = vmatprep.subr.mxu0 0.0
          %1918 = vmatpush2.msra.mxu0 0.0
          %1919 = vmatprep.subr.mxu0 0.0
          %1920 = vmatpush2.msra.mxu0 0.0
          %1921 = vmatprep.subr.mxu0 0.0
          %1922 = vmatpush2.msra.mxu0 0.0
          %1923 = vmatprep.subr.mxu0 0.0
          %1924 = vmatpush2.msra.mxu0 0.0
          %1925 = vmatprep.subr.mxu0 0.0
          %1926 = vmatpush2.msra.mxu0 0.0
          %1927 = vmatprep.subr.mxu0 0.0
          %1928 = vmatpush2.msra.mxu0 0.0
          %1929 = vmatprep.subr.mxu0 0.0
          %1930 = vmatpush2.msra.mxu0 0.0
          %1931 = vmatprep.subr.mxu0 0.0
          %1932 = vmatpush2.msra.mxu0 0.0
          %1933 = vmatprep.subr.mxu0 0.0
          %1934 = vmatpush2.msra.mxu0 0.0
          %1935 = vmatprep.subr.mxu0 0.0
          %1936 = vmatpush2.msra.mxu0 0.0
          %1937 = vmatprep.subr.mxu0 0.0
          %1938 = vmatpush2.msra.mxu0 0.0
          %1939 = vmatprep.mubr.f32.mxu0 0.0
          %1940 = vmatmul.mubr.f32.gmra.mxu0 %v1864
          %v1941 = vpop.f32.mrf.mxu0
          %v1942 = vadd.f32 0.0, %v1941
          %v1943 = vpop.f32.mrf.mxu0
          %1944 = vmatprep.mubr.f32.mxu0 0.0
          %1945 = vmatmul.mubr.f32.gmra.mxu0 %v1867
          %v1946 = vpop.f32.mrf.mxu0
          %v1947 = vadd.f32 0.0, %v1946
          %v1948 = vpop.f32.mrf.mxu0
          %1949 = vmatprep.mubr.f32.mxu0 0.0
          %1950 = vmatmul.mubr.f32.gmra.mxu0 %v1870
          %v1951 = vpop.f32.mrf.mxu0
          %v1952 = vadd.f32 0.0, %v1951
          %v1953 = vpop.f32.mrf.mxu0
          %1954 = vmatprep.mubr.f32.mxu0 0.0
          %1955 = vmatmul.mubr.f32.gmra.mxu0 %v1873
          %v1956 = vpop.f32.mrf.mxu0
          %v1957 = vadd.f32 0.0, %v1956
          %v1958 = vpop.f32.mrf.mxu0
          %1959 = vdwg.mxu0
          %v1960 = vld [vmem:[%s1] sm:$0xf]
          %v1961 = vld [vmem:[%s2] sm:$0xf]
          %v1963 = vsel %vm377, %v1960, 0
          %1965 = vmatprep.subr.mxu0 0.0
          %1966 = vmatpush1.msra.mxu0 0.0
          %1967 = vmatprep.subr.mxu0 0.0
          %1968 = vmatpush1.msra.mxu0 0.0
          %1969 = vmatprep.subr.mxu0 0.0
          %1970 = vmatpush1.msra.mxu0 0.0
          %1971 = vmatprep.subr.mxu0 0.0
          %1972 = vmatpush1.msra.mxu0 0.0
          %1973 = vmatprep.subr.mxu0 0.0
          %1974 = vmatpush1.msra.mxu0 0.0
          %1975 = vmatprep.subr.mxu0 0.0
          %1976 = vmatpush1.msra.mxu0 0.0
          %1977 = vmatprep.subr.mxu0 0.0
          %1978 = vmatpush1.msra.mxu0 0.0
          %1979 = vmatprep.subr.mxu0 0.0
          %1980 = vmatpush1.msra.mxu0 0.0
          %1981 = vmatprep.subr.mxu0 0.0
          %1982 = vmatpush1.msra.mxu0 0.0
          %1983 = vmatprep.subr.mxu0 0.0
          %1984 = vmatpush1.msra.mxu0 0.0
          %1985 = vmatprep.subr.mxu0 0.0
          %1986 = vmatpush1.msra.mxu0 0.0
          %1987 = vmatprep.subr.mxu0 0.0
          %1988 = vmatpush1.msra.mxu0 0.0
          %1989 = vmatprep.subr.mxu0 0.0
          %1990 = vmatpush1.msra.mxu0 %v1957
          %1991 = vmatprep.subr.mxu0 0.0
          %1992 = vmatpush1.msra.mxu0 %v1952
          %1993 = vmatprep.subr.mxu0 0.0
          %1994 = vmatpush1.msra.mxu0 %v1947
          %1995 = vmatprep.subr.mxu0 0.0
          %1996 = vmatpush1.msra.mxu0 %v1942
          %1997 = vmatprep.subr.mxu0 0.0
          %1998 = vmatpush2.msra.mxu0 0.0
          %1999 = vmatprep.subr.mxu0 0.0
          %2000 = vmatpush2.msra.mxu0 0.0
          %2001 = vmatprep.subr.mxu0 0.0
          %2002 = vmatpush2.msra.mxu0 0.0
          %2003 = vmatprep.subr.mxu0 0.0
          %2004 = vmatpush2.msra.mxu0 0.0
          %2005 = vmatprep.subr.mxu0 0.0
          %2006 = vmatpush2.msra.mxu0 0.0
          %2007 = vmatprep.subr.mxu0 0.0
          %2008 = vmatpush2.msra.mxu0 0.0
          %2009 = vmatprep.subr.mxu0 0.0
          %2010 = vmatpush2.msra.mxu0 0.0
          %2011 = vmatprep.subr.mxu0 0.0
          %2012 = vmatpush2.msra.mxu0 0.0
          %2013 = vmatprep.subr.mxu0 0.0
          %2014 = vmatpush2.msra.mxu0 0.0
          %2015 = vmatprep.subr.mxu0 0.0
          %2016 = vmatpush2.msra.mxu0 0.0
          %2017 = vmatprep.subr.mxu0 0.0
          %2018 = vmatpush2.msra.mxu0 0.0
          %2019 = vmatprep.subr.mxu0 0.0
          %2020 = vmatpush2.msra.mxu0 0.0
          %2021 = vmatprep.subr.mxu0 0.0
          %2022 = vmatpush2.msra.mxu0 0.0
          %2023 = vmatprep.subr.mxu0 0.0
          %2024 = vmatpush2.msra.mxu0 0.0
          %2025 = vmatprep.subr.mxu0 0.0
          %2026 = vmatpush2.msra.mxu0 0.0
          %2027 = vmatprep.subr.mxu0 0.0
          %2028 = vmatpush2.msra.mxu0 0.0
          %2029 = vmatprep.mubr.f32.mxu0 0.0
          %2030 = vmatmul.mubr.f32.gmra.mxu0 %v1963
          %v2031 = vpop.f32.mrf.mxu0
          %v2032 = vadd.f32 %v1961, %v2031
          %v2033 = vpop.f32.mrf.mxu0
          %2034 = vdwg.mxu0
          %v2035 = vmax.f32 %v2032, 0.0
          %v2036 = vld [vmem:[%s3] sm:$0xff]
          %v2037 = vld [vmem:[%s3 + $0x8] sm:$0xff]
          %v2038 = vld [vmem:[%s3 + $0x10] sm:$0xff]
          %v2039 = vld [vmem:[%s3 + $0x18] sm:$0xff]
          %v2040 = vld [vmem:[%s4] sm:$0xff]
          %v2041 = vld [vmem:[%s4 + $0x8] sm:$0xff]
          %v2042 = vld [vmem:[%s4 + $0x10] sm:$0xff]
          %v2043 = vld [vmem:[%s4 + $0x18] sm:$0xff]
          %vm2044 = vcmask 31744
          %v2046 = vsel %vm2044, %v2036, 0
          %v2049 = vsel %vm2044, %v2037, 0
          %v2052 = vsel %vm2044, %v2038, 0
          %v2055 = vsel %vm2044, %v2039, 0
          %vm2057 = vcmask 1043456
          %v2059 = vsel %vm2057, %v2035, 0
          %2061 = vmatprep.subr.mxu0 0.0
          %2062 = vmatpush1.msra.mxu0 0.0
          %2063 = vmatprep.subr.mxu0 0.0
          %2064 = vmatpush1.msra.mxu0 0.0
          %2065 = vmatprep.subr.mxu0 0.0
          %2066 = vmatpush1.msra.mxu0 0.0
          %2067 = vmatprep.subr.mxu0 0.0
          %2068 = vmatpush1.msra.mxu0 0.0
          %2069 = vmatprep.subr.mxu0 0.0
          %2070 = vmatpush1.msra.mxu0 0.0
          %2071 = vmatprep.subr.mxu0 0.0
          %2072 = vmatpush1.msra.mxu0 0.0
          %2073 = vmatprep.subr.mxu0 0.0
          %2074 = vmatpush1.msra.mxu0 0.0
          %2075 = vmatprep.subr.mxu0 0.0
          %2076 = vmatpush1.msra.mxu0 0.0
          %2077 = vmatprep.subr.mxu0 0.0
          %2078 = vmatpush1.msra.mxu0 0.0
          %2079 = vmatprep.subr.mxu0 0.0
          %2080 = vmatpush1.msra.mxu0 0.0
          %2081 = vmatprep.subr.mxu0 0.0
          %2082 = vmatpush1.msra.mxu0 0.0
          %2083 = vmatprep.subr.mxu0 0.0
          %2084 = vmatpush1.msra.mxu0 0.0
          %2085 = vmatprep.subr.mxu0 0.0
          %2086 = vmatpush1.msra.mxu0 0.0
          %2087 = vmatprep.subr.mxu0 0.0
          %2088 = vmatpush1.msra.mxu0 0.0
          %2089 = vmatprep.subr.mxu0 0.0
          %2090 = vmatpush1.msra.mxu0 0.0
          %2091 = vmatprep.subr.mxu0 0.0
          %2092 = vmatpush1.msra.mxu0 %v2059
          %2093 = vmatprep.subr.mxu0 0.0
          %2094 = vmatpush2.msra.mxu0 0.0
          %2095 = vmatprep.subr.mxu0 0.0
          %2096 = vmatpush2.msra.mxu0 0.0
          %2097 = vmatprep.subr.mxu0 0.0
          %2098 = vmatpush2.msra.mxu0 0.0
          %2099 = vmatprep.subr.mxu0 0.0
          %2100 = vmatpush2.msra.mxu0 0.0
          %2101 = vmatprep.subr.mxu0 0.0
          %2102 = vmatpush2.msra.mxu0 0.0
          %2103 = vmatprep.subr.mxu0 0.0
          %2104 = vmatpush2.msra.mxu0 0.0
          %2105 = vmatprep.subr.mxu0 0.0
          %2106 = vmatpush2.msra.mxu0 0.0
          %2107 = vmatprep.subr.mxu0 0.0
          %2108 = vmatpush2.msra.mxu0 0.0
          %2109 = vmatprep.subr.mxu0 0.0
          %2110 = vmatpush2.msra.mxu0 0.0
          %2111 = vmatprep.subr.mxu0 0.0
          %2112 = vmatpush2.msra.mxu0 0.0
          %2113 = vmatprep.subr.mxu0 0.0
          %2114 = vmatpush2.msra.mxu0 0.0
          %2115 = vmatprep.subr.mxu0 0.0
          %2116 = vmatpush2.msra.mxu0 0.0
          %2117 = vmatprep.subr.mxu0 0.0
          %2118 = vmatpush2.msra.mxu0 0.0
          %2119 = vmatprep.subr.mxu0 0.0
          %2120 = vmatpush2.msra.mxu0 0.0
          %2121 = vmatprep.subr.mxu0 0.0
          %2122 = vmatpush2.msra.mxu0 0.0
          %2123 = vmatprep.subr.mxu0 0.0
          %2124 = vmatpush2.msra.mxu0 0.0
          %2125 = vmatprep.mubr.f32.mxu0 0.0
          %2126 = vmatmul.mubr.f32.gmra.mxu0 %v2046
          %v2127 = vpop.f32.mrf.mxu0
          %v2128 = vadd.f32 %v2040, %v2127
          %v2129 = vpop.f32.mrf.mxu0
          %2130 = vmatprep.mubr.f32.mxu0 0.0
          %2131 = vmatmul.mubr.f32.gmra.mxu0 %v2049
          %v2132 = vpop.f32.mrf.mxu0
          %v2133 = vadd.f32 %v2041, %v2132
          %v2134 = vpop.f32.mrf.mxu0
          %2135 = vmatprep.mubr.f32.mxu0 0.0
          %2136 = vmatmul.mubr.f32.gmra.mxu0 %v2052
          %v2137 = vpop.f32.mrf.mxu0
          %v2138 = vadd.f32 %v2042, %v2137
          %v2139 = vpop.f32.mrf.mxu0
          %2140 = vmatprep.mubr.f32.mxu0 0.0
          %2141 = vmatmul.mubr.f32.gmra.mxu0 %v2055
          %v2142 = vpop.f32.mrf.mxu0
          %v2143 = vadd.f32 %v2043, %v2142
          %v2144 = vpop.f32.mrf.mxu0
          %2145 = vdwg.mxu0
          %v2146 = vxor.u32 %v2128, 2147483648
          %v2147 = vxor.u32 %v2133, 2147483648
          %v2148 = vxor.u32 %v2138, 2147483648
          %v2149 = vxor.u32 %v2143, 2147483648
          %v2150 = vmul.f32 %v2146, 1.442695
          %v2151 = vpow.pop %v2150
          %v2152 = vmul.f32 %v2147, 1.442695
          %v2153 = vpow.pop %v2152
          %v2154 = vmul.f32 %v2148, 1.442695
          %v2155 = vpow.pop %v2154
          %v2156 = vmul.f32 %v2149, 1.442695
          %v2157 = vpow.pop %v2156
          %v2158 = vadd.f32 %v2151, 1.0
          %v2159 = vadd.f32 %v2153, 1.0
          %v2160 = vadd.f32 %v2155, 1.0
          %v2161 = vadd.f32 %v2157, 1.0
          %v2162 = vrcp.pop %v2158
          %v2163 = vmul.f32 1.0, %v2162
          %v2164 = vrcp.pop %v2159
          %v2165 = vmul.f32 1.0, %v2164
          %v2166 = vrcp.pop %v2160
          %v2167 = vmul.f32 1.0, %v2166
          %v2168 = vrcp.pop %v2161
          %v2169 = vmul.f32 1.0, %v2168
          %2170 = vst.msk [vmem:[%s261] sm:$0xff] %vm475, %v2163
          %2171 = vst.msk [vmem:[%s261 + $0x8] sm:$0xff] %vm475, %v2165
          %2172 = vst.msk [vmem:[%s261 + $0x10] sm:$0xff] %vm475, %v2167
          %2173 = vst.msk [vmem:[%s261 + $0x18] sm:$0xff] %vm475, %v2169
        $region52: #{tpu_custom_call.1} parent=39 // pred_fallthru
          _
        %p2174 = scmp.lt.s32.totalorder %s23, 1
        %s2175 = scalar_select %p2174, %s23, 1
        %s2176 = smul.addr %s2175, 4
        %s2177 = smul.addr %s2176, 8
        %s2178 = scalar_lea.vmem %s5, %s2177
        // Predicated region
        $region53: #{tpu_custom_call.1} parent=39 // pred_check
          %p2179 = pneg %p161
        $region54: #{tpu_custom_call.1} parent=39 // pred_check_branch
          %2181 = sbr.rel (%p2179) target = $region56
        $region55: #{tpu_custom_call.1} parent=39 // pred_region
          _
        $region56: #{tpu_custom_call.1} parent=39 // pred_fallthru
          _
      $region40: #{tpu_custom_call.1} parent=5 // pred_fallthru
        _
      %p2182 = scmp.le.s32.totalorder 2, %s14
      // Predicated region
      $region57: #{tpu_custom_call.1} parent=5 // pred_check
        %p2183 = pneg %p2182
      $region58: #{tpu_custom_call.1} parent=5 // pred_check_branch
        %2185 = sbr.rel (%p2183) target = $region60
      $region59: #{tpu_custom_call.1} parent=5 // pred_region
        %s2186 = ssub.s32 %s14, 2
        // Predicated region
        $region61: #{tpu_custom_call.1} parent=59 // pred_check
          %p2187 = pneg %p167
        $region62: #{tpu_custom_call.1} parent=59 // pred_check_branch
          %2189 = sbr.rel (%p2187) target = $region64
        $region63: #{tpu_custom_call.1} parent=59 // pred_region
          %p2190 = scmp.lt.s32.totalorder %s25, 1
          %s2191 = scalar_select %p2190, %s25, 1
          %s2192 = smul.addr %s2191, 4
          %s2193 = smul.addr %s2192, 8
          %s2194 = scalar_lea.vmem %s5, %s2193
        $region64: #{tpu_custom_call.1} parent=59 // pred_fallthru
          _
      $region60: #{tpu_custom_call.1} parent=5 // pred_fallthru
        _
    $region6: #{tpu_custom_call.1} parent=1 // loop_footer
      %s18 = sadd.s32 1, %s14
    $region7: #{tpu_custom_call.1} parent=1 // loop_footer_branch
      %13 = sbr.rel target = $region3
    $region8: #{tpu_custom_call.1} parent=1 // loop_exit
      _
    %2195 = vsyncpa [#allocation5], 1
    %s2196 = scalar_lea.sflag [#allocation5], 1
    %2197 = vsyncpa %s2196, 1

</llo_original>
